<compile_context>
chip_gen: v5e
topology: v5e:2x2
jax: 0.10.0
libtpu: 0.0.40
codegen_flags: <defaults>
</compile_context>

<pallas_src>
import jax
import jax.numpy as jnp
from jax.experimental import pallas as pl
from jax.experimental.pallas import tpu as pltpu

# ---- problem sizes (small, consistent with the module) ----
B = 8              # number of graphs (all processed in a single grid step)
N = 16             # nodes per graph
F_IN = 32          # in_dim
D_OUT = 16         # out_dim per head
H = 4              # num_heads
HD = H * D_OUT     # 64
W_AUG_PAD = 128    # padded column count of the fused weight matrix
LRELU_ALPHA = 0.2
NEG_BIG = -1e30    # finite mask bias (keeps the row max finite)


def gat_kernel(w_ref, feat_ref, bias_ref, mask_ref, out_ref):
    feat = feat_ref[...]              # [B*N, F_IN]   bf16
    w_aug = w_ref[...]                # [F_IN, 128]   bf16

    # --- one fused MXU matmul: per-head features + src/dst attention scores ---
    fta = jnp.dot(feat, w_aug, preferred_element_type=jnp.float32)   # [B*N, 128] f32

    ft = fta[:, :HD]                              # [B*N, H*D]  per-head features
    scores = fta[:, HD:HD + 2 * H]                # [B*N, 2H]   (a1 | a2), one aligned slice

    # [B, 2H, N]: per-graph (channel, node) rows -- one small batched transpose.
    sc = jnp.transpose(scores.reshape(B, N, 2 * H), (0, 2, 1))
    a_src = sc[:, :H, :]                          # [B, H, N]  source-side scores a1
    a_dst = sc[:, H:, :]                          # [B, H, N]  destination-side  a2

    # e[b, h, d, s] = LeakyReLU(a1[b, s, h] + a2[b, d, h]) + mask_bias[b, d, s]
    e = a_src[:, :, None, :] + a_dst[:, :, :, None]              # [B, H, N, N]
    e = jnp.where(e > 0.0, e, LRELU_ALPHA * e)                   # LeakyReLU (pre-mask)
    e = e + bias_ref[...]                                        # masked edges -> ~-1e30

    # --- edge softmax over incoming edges (src axis), all graphs/heads at once ---
    m = jnp.max(e, axis=-1, keepdims=True)
    p = jnp.exp(e - m)                                           # masked exp underflows to 0
    denom = jnp.sum(p, axis=-1, keepdims=True)
    alpha = p * pl.reciprocal(denom, approx=True)                # [B, H, N, N] f32

    # --- aggregation: one [H*N, N] @ [N, H*D] matmul per graph; off-diagonal
    #     head blocks zeroed with the precomputed mask, folded with sublane sums.
    ft_bf = ft.astype(jnp.bfloat16)                              # cast at MXU boundary
    fold_mask = mask_ref[...]                                    # [H*N, H*D] f32 0/1

    outs = []
    for b in range(B):                                           # static unroll, B = 8
        alpha_b = alpha[b].reshape(H * N, N).astype(jnp.bfloat16)          # [H*N, N]
        ft_b = ft_bf[b * N:(b + 1) * N, :]                                  # [N, H*D]
        agg = jnp.dot(alpha_b, ft_b, preferred_element_type=jnp.float32)    # [H*N, H*D]
        agg = agg * fold_mask                                               # keep h==h' blocks
        outs.append(jnp.sum(agg.reshape(H, N, HD), axis=0))                 # [N, H*D]

    # Pack two graphs side by side -> lane-dense [B//2*N, 2*HD] = [64, 128] store.
    packed = jnp.concatenate(
        [jnp.concatenate([outs[2 * p], outs[2 * p + 1]], axis=1)
         for p in range(B // 2)],
        axis=0)

    # ELU (alpha = 1), f32
    out_ref[...] = jnp.where(packed > 0.0, packed,
                             jnp.exp(jnp.minimum(packed, 0.0)) - 1.0)


def gat_forward(feat, w, attn_l, attn_r, adj):
    """feat: [B, N, F_in] f32, w: [F_in, H*D] f32, attn_l/r: [H, D] f32,
    adj: [B, N, N] f32 with adj[b, s, d] = 1 iff edge s -> d."""
    b = feat.shape[0]
    assert b == B and B % 2 == 0

    # Fused, lane-padded weight [ W | W@Al | W@Ar | 0 ] so ft, a1, a2 come from
    # one kernel matmul with aligned output slices.
    w3 = w.reshape(F_IN, H, D_OUT)
    wl = jnp.einsum('fhd,hd->fh', w3, attn_l)                    # [F_in, H]
    wr = jnp.einsum('fhd,hd->fh', w3, attn_r)                    # [F_in, H]
    w_aug = jnp.zeros((F_IN, W_AUG_PAD), jnp.float32)
    w_aug = w_aug.at[:, :HD].set(w)
    w_aug = w_aug.at[:, HD:HD + H].set(wl)
    w_aug = w_aug.at[:, HD + H:HD + 2 * H].set(wr)
    w_aug = w_aug.astype(jnp.bfloat16)

    feat_flat = feat.reshape(b * N, F_IN).astype(jnp.bfloat16)   # [B*N, F_in]

    # Additive mask bias in (dst, src) orientation, pre-broadcast over heads.
    bias = jnp.where(jnp.transpose(adj, (0, 2, 1)) > 0, 0.0, NEG_BIG)
    bias = jnp.broadcast_to(bias[:, None, :, :].astype(jnp.float32), (b, H, N, N))

    # Static block-diagonal head-selector mask (hoisted out of the kernel).
    rows = jnp.arange(H * N)[:, None] // N
    cols = jnp.arange(HD)[None, :] // D_OUT
    fold_mask = (rows == cols).astype(jnp.float32)               # [H*N, H*D]

    out_packed = pl.pallas_call(
        gat_kernel,
        out_shape=jax.ShapeDtypeStruct((b // 2 * N, 2 * HD), jnp.float32),
        grid=(1,),
        in_specs=[
            pl.BlockSpec((F_IN, W_AUG_PAD), lambda i: (0, 0)),          # fused weights
            pl.BlockSpec((b * N, F_IN), lambda i: (0, 0)),              # all node features
            pl.BlockSpec((b, H, N, N), lambda i: (0, 0, 0, 0)),         # mask bias
            pl.BlockSpec((H * N, HD), lambda i: (0, 0)),                # fold mask
        ],
        out_specs=pl.BlockSpec((b // 2 * N, 2 * HD), lambda i: (0, 0)),
        compiler_params=pltpu.CompilerParams(
            dimension_semantics=("arbitrary",),
        ),
    )(w_aug, feat_flat, bias, fold_mask)

    # Undo the two-graphs-per-row lane packing: [B//2*N, 2*HD] -> [B, N, HD].
    return (out_packed.reshape(b // 2, N, 2, HD)
            .transpose(0, 2, 1, 3)
            .reshape(b, N, HD))


def gat_reference(feat, w, attn_l, attn_r, adj):
    """Pure-JAX f32 reference mirroring the DGL GATLayer forward."""
    b = feat.shape[0]
    ft = jnp.einsum('bnf,fk->bnk', feat, w).reshape(b, N, H, D_OUT)
    a1 = jnp.einsum('bnhd,hd->bnh', ft, attn_l)
    a2 = jnp.einsum('bnhd,hd->bnh', ft, attn_r)
    e = a1[:, :, None, :] + a2[:, None, :, :]            # [b, src, dst, H]
    e = jnp.where(e > 0, e, LRELU_ALPHA * e)
    mask = (adj > 0)[..., None]
    e_m = jnp.where(mask, e, NEG_BIG)
    m = jnp.max(e_m, axis=1, keepdims=True)
    p = jnp.where(mask, jnp.exp(e_m - m), 0.0)
    alpha = p / jnp.sum(p, axis=1, keepdims=True)
    out = jnp.einsum('bsdh,bshk->bdhk', alpha, ft).reshape(b, N, HD)
    return jnp.where(out > 0, out, jnp.exp(jnp.minimum(out, 0.0)) - 1.0)


if __name__ == "__main__":
    key = jax.random.PRNGKey(0)
    k_feat, k_w, k_al, k_ar, k_adj = jax.random.split(key, 5)

    feat = jax.random.normal(k_feat, (B, N, F_IN), jnp.float32)
    w = jax.random.normal(k_w, (F_IN, HD), jnp.float32) * (1.0 / jnp.sqrt(F_IN))
    attn_l = jax.random.normal(k_al, (H, D_OUT), jnp.float32) * 0.1
    attn_r = jax.random.normal(k_ar, (H, D_OUT), jnp.float32) * 0.1

    # deterministic random sparse directed graphs + self-loops (in-degree >= 1)
    adj = (jax.random.uniform(k_adj, (B, N, N)) < 0.2).astype(jnp.float32)
    idx = jnp.arange(N)
    adj = adj.at[:, idx, idx].set(1.0)

    out = gat_forward(feat, w, attn_l, attn_r, adj)
    jax.block_until_ready(out)

    ref = gat_reference(feat, w, attn_l, attn_r, adj)
    assert out.shape == (B, N, HD)
    # bf16 MXU operands (f32 accumulate) + approx reciprocal -> compare vs f32
    # reference at bf16-level tolerance.
    max_err = jnp.max(jnp.abs(out - ref))
    assert jnp.allclose(out, ref, rtol=2e-2, atol=2e-2), (
        f"mismatch vs reference, max abs err = {max_err}")

    print("KERNEL_OK")
</pallas_src>

<mosaic_0001>
module attributes {stable_mosaic.version = 11 : i64} {
  func.func @gat_kernel(%arg0: i32, %arg1: memref<32x128xbf16, #tpu.memory_space<vmem>>, %arg2: memref<128x32xbf16, #tpu.memory_space<vmem>>, %arg3: memref<8x4x16x16xf32, #tpu.memory_space<vmem>>, %arg4: memref<64x64xf32, #tpu.memory_space<vmem>>, %arg5: memref<64x128xf32, #tpu.memory_space<vmem>>) attributes {dimension_semantics = [#tpu.dimension_semantics<arbitrary>], iteration_bounds = array<i64: 1>, scalar_prefetch = 0 : i64, scratch_operands = 0 : i64, tpu.core_type = #tpu.core_type<tc>, window_params = [{pipeline_mode = #tpu.pipeline_mode<synchronous>, transform_indices = @transform_0, window_bounds = array<i64: 32, 128>}, {pipeline_mode = #tpu.pipeline_mode<synchronous>, transform_indices = @transform_1, window_bounds = array<i64: 128, 32>}, {pipeline_mode = #tpu.pipeline_mode<synchronous>, transform_indices = @transform_2, window_bounds = array<i64: 8, 4, 16, 16>}, {pipeline_mode = #tpu.pipeline_mode<synchronous>, transform_indices = @transform_3, window_bounds = array<i64: 64, 64>}, {pipeline_mode = #tpu.pipeline_mode<synchronous>, transform_indices = @transform_4, window_bounds = array<i64: 64, 128>}]} {
    %c0 = arith.constant 0 : index
    %c0_0 = arith.constant 0 : index
    %0 = vector.load %arg2[%c0, %c0_0] : memref<128x32xbf16, #tpu.memory_space<vmem>>, vector<128x32xbf16>
    %c0_1 = arith.constant 0 : index
    %c0_2 = arith.constant 0 : index
    %1 = vector.load %arg1[%c0_1, %c0_2] : memref<32x128xbf16, #tpu.memory_space<vmem>>, vector<32x128xbf16>
    %cst = arith.constant dense<0.000000e+00> : vector<128x128xf32>
    %2 = tpu.matmul %0, %1, %cst {dimension_numbers = #tpu.dot_dimension_numbers<[1], [0], [0], [1], [0, 0, 1, 1], [], []>} : vector<128x32xbf16>, vector<32x128xbf16>, vector<128x128xf32> -> vector<128x128xf32>
    %3 = vector.extract_strided_slice %2 {offsets = [0, 0], sizes = [128, 64], strides = [1, 1]} : vector<128x128xf32> to vector<128x64xf32>
    %4 = vector.extract_strided_slice %2 {offsets = [0, 64], sizes = [128, 8], strides = [1, 1]} : vector<128x128xf32> to vector<128x8xf32>
    %5 = vector.shape_cast %4 : vector<128x8xf32> to vector<8x16x8xf32>
    %6 = tpu.transpose %5, [0, 2, 1] : vector<8x16x8xf32> -> vector<8x8x16xf32>
    %7 = vector.extract_strided_slice %6 {offsets = [0, 0, 0], sizes = [8, 4, 16], strides = [1, 1, 1]} : vector<8x8x16xf32> to vector<8x4x16xf32>
    %8 = vector.extract_strided_slice %6 {offsets = [0, 4, 0], sizes = [8, 4, 16], strides = [1, 1, 1]} : vector<8x8x16xf32> to vector<8x4x16xf32>
    %9 = vector.shape_cast %7 : vector<8x4x16xf32> to vector<8x4x1x16xf32>
    %10 = vector.shape_cast %8 : vector<8x4x16xf32> to vector<8x4x16x1xf32>
    %11 = vector.broadcast %9 : vector<8x4x1x16xf32> to vector<8x4x16x16xf32>
    %12 = vector.broadcast %10 : vector<8x4x16x1xf32> to vector<8x4x16x16xf32>
    %13 = arith.addf %11, %12 : vector<8x4x16x16xf32>
    %cst_3 = arith.constant 0.000000e+00 : f32
    %14 = vector.broadcast %cst_3 : f32 to vector<8x4x16x16xf32>
    %15 = arith.cmpf ogt, %13, %14 : vector<8x4x16x16xf32>
    %cst_4 = arith.constant 2.000000e-01 : f32
    %16 = vector.broadcast %cst_4 : f32 to vector<8x4x16x16xf32>
    %17 = arith.mulf %16, %13 : vector<8x4x16x16xf32>
    %18 = arith.select %15, %13, %17 : vector<8x4x16x16xi1>, vector<8x4x16x16xf32>
    %c0_5 = arith.constant 0 : index
    %c0_6 = arith.constant 0 : index
    %c0_7 = arith.constant 0 : index
    %c0_8 = arith.constant 0 : index
    %19 = vector.load %arg3[%c0_5, %c0_6, %c0_7, %c0_8] : memref<8x4x16x16xf32, #tpu.memory_space<vmem>>, vector<8x4x16x16xf32>
    %20 = arith.addf %18, %19 : vector<8x4x16x16xf32>
    %cst_9 = arith.constant dense<0xFF800000> : vector<8x4x16xf32>
    %21 = vector.multi_reduction <maximumf>, %20, %cst_9 [3] : vector<8x4x16x16xf32> to vector<8x4x16xf32>
    %22 = vector.shape_cast %21 : vector<8x4x16xf32> to vector<8x4x16x1xf32>
    %23 = vector.broadcast %22 : vector<8x4x16x1xf32> to vector<8x4x16x16xf32>
    %24 = arith.subf %20, %23 : vector<8x4x16x16xf32>
    %25 = math.exp %24 : vector<8x4x16x16xf32>
    %cst_10 = arith.constant dense<0.000000e+00> : vector<8x4x16xf32>
    %26 = vector.multi_reduction <add>, %25, %cst_10 [3] : vector<8x4x16x16xf32> to vector<8x4x16xf32>
    %27 = vector.shape_cast %26 : vector<8x4x16xf32> to vector<8x4x16x1xf32>
    %28 = tpu.reciprocal %27 {approx = true} : vector<8x4x16x1xf32> -> vector<8x4x16x1xf32>
    %29 = vector.broadcast %28 : vector<8x4x16x1xf32> to vector<8x4x16x16xf32>
    %30 = arith.mulf %25, %29 : vector<8x4x16x16xf32>
    %31 = arith.truncf %3 : vector<128x64xf32> to vector<128x64xbf16>
    %c0_11 = arith.constant 0 : index
    %c0_12 = arith.constant 0 : index
    %32 = vector.load %arg4[%c0_11, %c0_12] : memref<64x64xf32, #tpu.memory_space<vmem>>, vector<64x64xf32>
    %33 = vector.extract_strided_slice %30 {offsets = [0, 0, 0, 0], sizes = [1, 4, 16, 16], strides = [1, 1, 1, 1]} : vector<8x4x16x16xf32> to vector<1x4x16x16xf32>
    %34 = vector.shape_cast %33 : vector<1x4x16x16xf32> to vector<4x16x16xf32>
    %35 = vector.shape_cast %34 : vector<4x16x16xf32> to vector<64x16xf32>
    %36 = arith.truncf %35 : vector<64x16xf32> to vector<64x16xbf16>
    %37 = vector.extract_strided_slice %31 {offsets = [0, 0], sizes = [16, 64], strides = [1, 1]} : vector<128x64xbf16> to vector<16x64xbf16>
    %cst_13 = arith.constant dense<0.000000e+00> : vector<64x64xf32>
    %38 = tpu.matmul %36, %37, %cst_13 {dimension_numbers = #tpu.dot_dimension_numbers<[1], [0], [0], [1], [0, 0, 1, 1], [], []>} : vector<64x16xbf16>, vector<16x64xbf16>, vector<64x64xf32> -> vector<64x64xf32>
    %39 = arith.mulf %38, %32 : vector<64x64xf32>
    %40 = vector.shape_cast %39 : vector<64x64xf32> to vector<4x16x64xf32>
    %cst_14 = arith.constant dense<0.000000e+00> : vector<16x64xf32>
    %41 = vector.multi_reduction <add>, %40, %cst_14 [0] : vector<4x16x64xf32> to vector<16x64xf32>
    %42 = vector.extract_strided_slice %30 {offsets = [1, 0, 0, 0], sizes = [1, 4, 16, 16], strides = [1, 1, 1, 1]} : vector<8x4x16x16xf32> to vector<1x4x16x16xf32>
    %43 = vector.shape_cast %42 : vector<1x4x16x16xf32> to vector<4x16x16xf32>
    %44 = vector.shape_cast %43 : vector<4x16x16xf32> to vector<64x16xf32>
    %45 = arith.truncf %44 : vector<64x16xf32> to vector<64x16xbf16>
    %46 = vector.extract_strided_slice %31 {offsets = [16, 0], sizes = [16, 64], strides = [1, 1]} : vector<128x64xbf16> to vector<16x64xbf16>
    %cst_15 = arith.constant dense<0.000000e+00> : vector<64x64xf32>
    %47 = tpu.matmul %45, %46, %cst_15 {dimension_numbers = #tpu.dot_dimension_numbers<[1], [0], [0], [1], [0, 0, 1, 1], [], []>} : vector<64x16xbf16>, vector<16x64xbf16>, vector<64x64xf32> -> vector<64x64xf32>
    %48 = arith.mulf %47, %32 : vector<64x64xf32>
    %49 = vector.shape_cast %48 : vector<64x64xf32> to vector<4x16x64xf32>
    %cst_16 = arith.constant dense<0.000000e+00> : vector<16x64xf32>
    %50 = vector.multi_reduction <add>, %49, %cst_16 [0] : vector<4x16x64xf32> to vector<16x64xf32>
    %51 = vector.extract_strided_slice %30 {offsets = [2, 0, 0, 0], sizes = [1, 4, 16, 16], strides = [1, 1, 1, 1]} : vector<8x4x16x16xf32> to vector<1x4x16x16xf32>
    %52 = vector.shape_cast %51 : vector<1x4x16x16xf32> to vector<4x16x16xf32>
    %53 = vector.shape_cast %52 : vector<4x16x16xf32> to vector<64x16xf32>
    %54 = arith.truncf %53 : vector<64x16xf32> to vector<64x16xbf16>
    %55 = vector.extract_strided_slice %31 {offsets = [32, 0], sizes = [16, 64], strides = [1, 1]} : vector<128x64xbf16> to vector<16x64xbf16>
    %cst_17 = arith.constant dense<0.000000e+00> : vector<64x64xf32>
    %56 = tpu.matmul %54, %55, %cst_17 {dimension_numbers = #tpu.dot_dimension_numbers<[1], [0], [0], [1], [0, 0, 1, 1], [], []>} : vector<64x16xbf16>, vector<16x64xbf16>, vector<64x64xf32> -> vector<64x64xf32>
    %57 = arith.mulf %56, %32 : vector<64x64xf32>
    %58 = vector.shape_cast %57 : vector<64x64xf32> to vector<4x16x64xf32>
    %cst_18 = arith.constant dense<0.000000e+00> : vector<16x64xf32>
    %59 = vector.multi_reduction <add>, %58, %cst_18 [0] : vector<4x16x64xf32> to vector<16x64xf32>
    %60 = vector.extract_strided_slice %30 {offsets = [3, 0, 0, 0], sizes = [1, 4, 16, 16], strides = [1, 1, 1, 1]} : vector<8x4x16x16xf32> to vector<1x4x16x16xf32>
    %61 = vector.shape_cast %60 : vector<1x4x16x16xf32> to vector<4x16x16xf32>
    %62 = vector.shape_cast %61 : vector<4x16x16xf32> to vector<64x16xf32>
    %63 = arith.truncf %62 : vector<64x16xf32> to vector<64x16xbf16>
    %64 = vector.extract_strided_slice %31 {offsets = [48, 0], sizes = [16, 64], strides = [1, 1]} : vector<128x64xbf16> to vector<16x64xbf16>
    %cst_19 = arith.constant dense<0.000000e+00> : vector<64x64xf32>
    %65 = tpu.matmul %63, %64, %cst_19 {dimension_numbers = #tpu.dot_dimension_numbers<[1], [0], [0], [1], [0, 0, 1, 1], [], []>} : vector<64x16xbf16>, vector<16x64xbf16>, vector<64x64xf32> -> vector<64x64xf32>
    %66 = arith.mulf %65, %32 : vector<64x64xf32>
    %67 = vector.shape_cast %66 : vector<64x64xf32> to vector<4x16x64xf32>
    %cst_20 = arith.constant dense<0.000000e+00> : vector<16x64xf32>
    %68 = vector.multi_reduction <add>, %67, %cst_20 [0] : vector<4x16x64xf32> to vector<16x64xf32>
    %69 = vector.extract_strided_slice %30 {offsets = [4, 0, 0, 0], sizes = [1, 4, 16, 16], strides = [1, 1, 1, 1]} : vector<8x4x16x16xf32> to vector<1x4x16x16xf32>
    %70 = vector.shape_cast %69 : vector<1x4x16x16xf32> to vector<4x16x16xf32>
    %71 = vector.shape_cast %70 : vector<4x16x16xf32> to vector<64x16xf32>
    %72 = arith.truncf %71 : vector<64x16xf32> to vector<64x16xbf16>
    %73 = vector.extract_strided_slice %31 {offsets = [64, 0], sizes = [16, 64], strides = [1, 1]} : vector<128x64xbf16> to vector<16x64xbf16>
    %cst_21 = arith.constant dense<0.000000e+00> : vector<64x64xf32>
    %74 = tpu.matmul %72, %73, %cst_21 {dimension_numbers = #tpu.dot_dimension_numbers<[1], [0], [0], [1], [0, 0, 1, 1], [], []>} : vector<64x16xbf16>, vector<16x64xbf16>, vector<64x64xf32> -> vector<64x64xf32>
    %75 = arith.mulf %74, %32 : vector<64x64xf32>
    %76 = vector.shape_cast %75 : vector<64x64xf32> to vector<4x16x64xf32>
    %cst_22 = arith.constant dense<0.000000e+00> : vector<16x64xf32>
    %77 = vector.multi_reduction <add>, %76, %cst_22 [0] : vector<4x16x64xf32> to vector<16x64xf32>
    %78 = vector.extract_strided_slice %30 {offsets = [5, 0, 0, 0], sizes = [1, 4, 16, 16], strides = [1, 1, 1, 1]} : vector<8x4x16x16xf32> to vector<1x4x16x16xf32>
    %79 = vector.shape_cast %78 : vector<1x4x16x16xf32> to vector<4x16x16xf32>
    %80 = vector.shape_cast %79 : vector<4x16x16xf32> to vector<64x16xf32>
    %81 = arith.truncf %80 : vector<64x16xf32> to vector<64x16xbf16>
    %82 = vector.extract_strided_slice %31 {offsets = [80, 0], sizes = [16, 64], strides = [1, 1]} : vector<128x64xbf16> to vector<16x64xbf16>
    %cst_23 = arith.constant dense<0.000000e+00> : vector<64x64xf32>
    %83 = tpu.matmul %81, %82, %cst_23 {dimension_numbers = #tpu.dot_dimension_numbers<[1], [0], [0], [1], [0, 0, 1, 1], [], []>} : vector<64x16xbf16>, vector<16x64xbf16>, vector<64x64xf32> -> vector<64x64xf32>
    %84 = arith.mulf %83, %32 : vector<64x64xf32>
    %85 = vector.shape_cast %84 : vector<64x64xf32> to vector<4x16x64xf32>
    %cst_24 = arith.constant dense<0.000000e+00> : vector<16x64xf32>
    %86 = vector.multi_reduction <add>, %85, %cst_24 [0] : vector<4x16x64xf32> to vector<16x64xf32>
    %87 = vector.extract_strided_slice %30 {offsets = [6, 0, 0, 0], sizes = [1, 4, 16, 16], strides = [1, 1, 1, 1]} : vector<8x4x16x16xf32> to vector<1x4x16x16xf32>
    %88 = vector.shape_cast %87 : vector<1x4x16x16xf32> to vector<4x16x16xf32>
    %89 = vector.shape_cast %88 : vector<4x16x16xf32> to vector<64x16xf32>
    %90 = arith.truncf %89 : vector<64x16xf32> to vector<64x16xbf16>
    %91 = vector.extract_strided_slice %31 {offsets = [96, 0], sizes = [16, 64], strides = [1, 1]} : vector<128x64xbf16> to vector<16x64xbf16>
    %cst_25 = arith.constant dense<0.000000e+00> : vector<64x64xf32>
    %92 = tpu.matmul %90, %91, %cst_25 {dimension_numbers = #tpu.dot_dimension_numbers<[1], [0], [0], [1], [0, 0, 1, 1], [], []>} : vector<64x16xbf16>, vector<16x64xbf16>, vector<64x64xf32> -> vector<64x64xf32>
    %93 = arith.mulf %92, %32 : vector<64x64xf32>
    %94 = vector.shape_cast %93 : vector<64x64xf32> to vector<4x16x64xf32>
    %cst_26 = arith.constant dense<0.000000e+00> : vector<16x64xf32>
    %95 = vector.multi_reduction <add>, %94, %cst_26 [0] : vector<4x16x64xf32> to vector<16x64xf32>
    %96 = vector.extract_strided_slice %30 {offsets = [7, 0, 0, 0], sizes = [1, 4, 16, 16], strides = [1, 1, 1, 1]} : vector<8x4x16x16xf32> to vector<1x4x16x16xf32>
    %97 = vector.shape_cast %96 : vector<1x4x16x16xf32> to vector<4x16x16xf32>
    %98 = vector.shape_cast %97 : vector<4x16x16xf32> to vector<64x16xf32>
    %99 = arith.truncf %98 : vector<64x16xf32> to vector<64x16xbf16>
    %100 = vector.extract_strided_slice %31 {offsets = [112, 0], sizes = [16, 64], strides = [1, 1]} : vector<128x64xbf16> to vector<16x64xbf16>
    %cst_27 = arith.constant dense<0.000000e+00> : vector<64x64xf32>
    %101 = tpu.matmul %99, %100, %cst_27 {dimension_numbers = #tpu.dot_dimension_numbers<[1], [0], [0], [1], [0, 0, 1, 1], [], []>} : vector<64x16xbf16>, vector<16x64xbf16>, vector<64x64xf32> -> vector<64x64xf32>
    %102 = arith.mulf %101, %32 : vector<64x64xf32>
    %103 = vector.shape_cast %102 : vector<64x64xf32> to vector<4x16x64xf32>
    %cst_28 = arith.constant dense<0.000000e+00> : vector<16x64xf32>
    %104 = vector.multi_reduction <add>, %103, %cst_28 [0] : vector<4x16x64xf32> to vector<16x64xf32>
    %105 = tpu.concatenate %41, %50 in 1 : vector<16x64xf32>, vector<16x64xf32> -> vector<16x128xf32>
    %106 = tpu.concatenate %59, %68 in 1 : vector<16x64xf32>, vector<16x64xf32> -> vector<16x128xf32>
    %107 = tpu.concatenate %77, %86 in 1 : vector<16x64xf32>, vector<16x64xf32> -> vector<16x128xf32>
    %108 = tpu.concatenate %95, %104 in 1 : vector<16x64xf32>, vector<16x64xf32> -> vector<16x128xf32>
    %109 = tpu.concatenate %105, %106, %107, %108 in 0 : vector<16x128xf32>, vector<16x128xf32>, vector<16x128xf32>, vector<16x128xf32> -> vector<64x128xf32>
    %cst_29 = arith.constant 0.000000e+00 : f32
    %110 = vector.broadcast %cst_29 : f32 to vector<64x128xf32>
    %111 = arith.cmpf ogt, %109, %110 : vector<64x128xf32>
    %cst_30 = arith.constant 0.000000e+00 : f32
    %112 = vector.broadcast %cst_30 : f32 to vector<64x128xf32>
    %113 = arith.minimumf %109, %112 : vector<64x128xf32>
    %114 = math.exp %113 : vector<64x128xf32>
    %cst_31 = arith.constant 1.000000e+00 : f32
    %115 = vector.broadcast %cst_31 : f32 to vector<64x128xf32>
    %116 = arith.subf %114, %115 : vector<64x128xf32>
    %117 = arith.select %111, %109, %116 : vector<64x128xi1>, vector<64x128xf32>
    %c0_32 = arith.constant 0 : index
    %c0_33 = arith.constant 0 : index
    %118 = vector.load %arg5[%c0_32, %c0_33] : memref<64x128xf32, #tpu.memory_space<vmem>>, vector<64x128xf32>
    tpu.vector_store %arg5[%c0_32, %c0_33], %117 {strides = array<i32>} : memref<64x128xf32, #tpu.memory_space<vmem>>, vector<64x128xf32>,
    return
  }
  func.func @transform_0(%arg0: i32) -> (i32, i32) {
    %c0_i32 = arith.constant 0 : i32
    %c0_i32_0 = arith.constant 0 : i32
    %c0_i32_1 = arith.constant 0 : i32
    return %c0_i32, %c0_i32_0 : i32, i32
  }
  func.func @transform_1(%arg0: i32) -> (i32, i32) {
    %c0_i32 = arith.constant 0 : i32
    %c0_i32_0 = arith.constant 0 : i32
    %c0_i32_1 = arith.constant 0 : i32
    return %c0_i32, %c0_i32_0 : i32, i32
  }
  func.func @transform_2(%arg0: i32) -> (i32, i32, i32, i32) {
    %c0_i32 = arith.constant 0 : i32
    %c0_i32_0 = arith.constant 0 : i32
    %c0_i32_1 = arith.constant 0 : i32
    %c0_i32_2 = arith.constant 0 : i32
    %c0_i32_3 = arith.constant 0 : i32
    return %c0_i32, %c0_i32_0, %c0_i32_1, %c0_i32_2 : i32, i32, i32, i32
  }
  func.func @transform_3(%arg0: i32) -> (i32, i32) {
    %c0_i32 = arith.constant 0 : i32
    %c0_i32_0 = arith.constant 0 : i32
    %c0_i32_1 = arith.constant 0 : i32
    return %c0_i32, %c0_i32_0 : i32, i32
  }
  func.func @transform_4(%arg0: i32) -> (i32, i32) {
    %c0_i32 = arith.constant 0 : i32
    %c0_i32_0 = arith.constant 0 : i32
    %c0_i32_1 = arith.constant 0 : i32
    return %c0_i32, %c0_i32_0 : i32, i32
  }
}

</mosaic_0001>

<llo_original>
// kernel: tpu_custom_call.1
$region0: #{tpu_custom_call.1}
  #allocation0 [shape = 'u32[]', space=smem, size = 0x4, offset = 0x4, fixed_abs, tag = 'smem constant byte address 0x4 - core index']
  #allocation1 [shape = 'u32[72,128]{1,0:T(1,128)}', space=vmem, size = 0x9000, scoped, tag = 'internal scratch']
  %s0 = inlined_call_operand.vmem [shape: bf16[32,128], index: 0, kind: input, shape index: {}]
  %s1 = inlined_call_operand.vmem [shape: bf16[128,32], index: 1, kind: input, shape index: {}]
  %s2 = inlined_call_operand.hbm [shape: f32[8,4,16,16], index: 2, kind: input, shape index: {}]
  %s3 = inlined_call_operand.vmem [shape: f32[64,64], index: 3, kind: input, shape index: {}]
  %s4 = inlined_call_operand.hbm [shape: f32[64,128], index: 4, kind: output, shape index: {}]
  %s5 = sld [smem:[#allocation0]]
  $region30: #{tpu_custom_call.1} parent=0
    _
  %s7 = ssub.s32 1, %s5
  %s8 = scalar_select 0, %s7, %s5
  $region1: #{tpu_custom_call.1} parent=0
    #allocation2 [shape = 'u8[262144]{0}', space=vmem, size = 0x40000, scoped, tag = 'input window, operand 2, single buffered']
    #allocation3 [shape = 's32[1]{0}', space=sflag, size = 0x4, scoped, tag = 'scoped memory for tpu_custom_call.1']
    #allocation4 [shape = 's32[1]{0}', space=sflag, size = 0x4, scoped, tag = 'scoped memory for tpu_custom_call.1']
    #allocation5 [shape = 'u8[32768]{0}', space=vmem, size = 0x8000, scoped, tag = 'output window, operand 0, single buffered']
    %9 = vsyncpa [#allocation3], 0
    %10 = vsyncpa [#allocation4], 0
    // Predicated region
    $region2: #{tpu_custom_call.1} parent=1 // pred_check
      _
    $region3: #{tpu_custom_call.1} parent=1 // pred_check_branch
      %12 = sbr.rel (0) target = $region5
    $region4: #{tpu_custom_call.1} parent=1 // pred_region
      _
    $region5: #{tpu_custom_call.1} parent=1 // pred_fallthru
      _
    // Predicated region
    $region6: #{tpu_custom_call.1} parent=1 // pred_check
      _
    $region7: #{tpu_custom_call.1} parent=1 // pred_check_branch
      %14 = sbr.rel (0) target = $region9
    $region8: #{tpu_custom_call.1} parent=1 // pred_region
      _
    $region9: #{tpu_custom_call.1} parent=1 // pred_fallthru
      _
    // Predicated region
    $region10: #{tpu_custom_call.1} parent=1 // pred_check
      _
    $region11: #{tpu_custom_call.1} parent=1 // pred_check_branch
      %16 = sbr.rel (0) target = $region13
    $region12: #{tpu_custom_call.1} parent=1 // pred_region
      %18 = vsyncadd [#allocation3], 0
      %s19 = sshll.u32 %s2, 4
      %s20 = int_to_ptr.hbm [resolvable:$true] %s19
      %s21 = sshll.u32 [#allocation2], 4
      %s22 = int_to_ptr.vmem [resolvable:$true] %s21
      %27 = dma.hbm_to_vmem [thread:$0]  %s20, 8192, %s22, [#allocation3], 128, 128, 8
    $region13: #{tpu_custom_call.1} parent=1 // pred_fallthru
      _
    // Predicated region
    $region14: #{tpu_custom_call.1} parent=1 // pred_check
      _
    $region15: #{tpu_custom_call.1} parent=1 // pred_check_branch
      %29 = sbr.rel (0) target = $region17
    $region16: #{tpu_custom_call.1} parent=1 // pred_region
      _
    $region17: #{tpu_custom_call.1} parent=1 // pred_fallthru
      _
    // Predicated region
    $region18: #{tpu_custom_call.1} parent=1 // pred_check
      _
    $region19: #{tpu_custom_call.1} parent=1 // pred_check_branch
      %31 = sbr.rel (0) target = $region21
    $region20: #{tpu_custom_call.1} parent=1 // pred_region
      %33 = dma.done [#allocation3], 8192
    $region21: #{tpu_custom_call.1} parent=1 // pred_fallthru
      _
    %v35 = vld [vmem:[%s1] sm:$0xf]
    %v36 = vld [vmem:[%s1 + $0x4] sm:$0xf]
    %v37 = vld [vmem:[%s1 + $0x8] sm:$0xf]
    %v38 = vld [vmem:[%s1 + $0xc] sm:$0xf]
    %v39 = vld [vmem:[%s1 + $0x10] sm:$0xf]
    %v40 = vld [vmem:[%s1 + $0x14] sm:$0xf]
    %v41 = vld [vmem:[%s1 + $0x18] sm:$0xf]
    %v42 = vld [vmem:[%s1 + $0x1c] sm:$0xf]
    %v43 = vld [vmem:[%s1 + $0x20] sm:$0xf]
    %v44 = vld [vmem:[%s1 + $0x24] sm:$0xf]
    %v45 = vld [vmem:[%s1 + $0x28] sm:$0xf]
    %v46 = vld [vmem:[%s1 + $0x2c] sm:$0xf]
    %v47 = vld [vmem:[%s1 + $0x30] sm:$0xf]
    %v48 = vld [vmem:[%s1 + $0x34] sm:$0xf]
    %v49 = vld [vmem:[%s1 + $0x38] sm:$0xf]
    %v50 = vld [vmem:[%s1 + $0x3c] sm:$0xf]
    %v51 = vld [vmem:[%s0] sm:$0xf]
    %v52 = vld [vmem:[%s0 + $0x4] sm:$0xf]
    %v53 = vld [vmem:[%s0 + $0x8] sm:$0xf]
    %v54 = vld [vmem:[%s0 + $0xc] sm:$0xf]
    %v71 = vunpack.c.l.b16 %v35
    %v72 = vunpack.c.l.b16 %v36
    %v73 = vunpack.c.l.b16 %v37
    %v74 = vunpack.c.l.b16 %v38
    %v75 = vunpack.c.l.b16 %v39
    %v76 = vunpack.c.l.b16 %v40
    %v77 = vunpack.c.l.b16 %v41
    %v78 = vunpack.c.l.b16 %v42
    %v79 = vunpack.c.l.b16 %v43
    %v80 = vunpack.c.l.b16 %v44
    %v81 = vunpack.c.l.b16 %v45
    %v82 = vunpack.c.l.b16 %v46
    %v83 = vunpack.c.l.b16 %v47
    %v84 = vunpack.c.l.b16 %v48
    %v85 = vunpack.c.l.b16 %v49
    %v86 = vunpack.c.l.b16 %v50
    %v87 = vpack.c.b16 %v72, %v71
    %v88 = vpack.c.b16 %v74, %v73
    %v89 = vpack.c.b16 %v76, %v75
    %v90 = vpack.c.b16 %v78, %v77
    %v91 = vpack.c.b16 %v80, %v79
    %v92 = vpack.c.b16 %v82, %v81
    %v93 = vpack.c.b16 %v84, %v83
    %v94 = vpack.c.b16 %v86, %v85
    %v99 = vunpack.c.l.b16 %v51
    %v100 = vunpack.c.l.b16 %v52
    %v101 = vunpack.c.l.b16 %v53
    %v102 = vunpack.c.l.b16 %v54
    %v103 = vpack.c.b16 %v100, %v99
    %v104 = vpack.c.b16 %v102, %v101
    %vm107 = vcmask 261120
    %v109 = vsel %vm107, %v87, 0
    %v112 = vsel %vm107, %v88, 0
    %v115 = vsel %vm107, %v89, 0
    %v118 = vsel %vm107, %v90, 0
    %v121 = vsel %vm107, %v91, 0
    %v124 = vsel %vm107, %v92, 0
    %v127 = vsel %vm107, %v93, 0
    %v130 = vsel %vm107, %v94, 0
    %132 = vmatpush.bf16.msra.mxu0 0
    %133 = vmatpush.bf16.msra.mxu0 0
    %134 = vmatpush.bf16.msra.mxu0 0
    %135 = vmatpush.bf16.msra.mxu0 0
    %136 = vmatpush.bf16.msra.mxu0 0
    %137 = vmatpush.bf16.msra.mxu0 0
    %138 = vmatpush.bf16.msra.mxu0 %v104
    %139 = vmatpush.bf16.msra.mxu0 %v103
    %140 = vmatmul.bf16.gmra.mxu0 %v109
    %v141 = vpop.f32.mrf.mxu0
    %v142 = vadd.f32 0.0, %v141
    %v143 = vpop.f32.mrf.mxu0
    %v144 = vadd.f32 0.0, %v143
    %145 = vmatmul.bf16.gmra.mxu0 %v112
    %v146 = vpop.f32.mrf.mxu0
    %v147 = vadd.f32 0.0, %v146
    %v148 = vpop.f32.mrf.mxu0
    %v149 = vadd.f32 0.0, %v148
    %150 = vmatmul.bf16.gmra.mxu0 %v115
    %v151 = vpop.f32.mrf.mxu0
    %v152 = vadd.f32 0.0, %v151
    %v153 = vpop.f32.mrf.mxu0
    %v154 = vadd.f32 0.0, %v153
    %155 = vmatmul.bf16.gmra.mxu0 %v118
    %v156 = vpop.f32.mrf.mxu0
    %v157 = vadd.f32 0.0, %v156
    %v158 = vpop.f32.mrf.mxu0
    %v159 = vadd.f32 0.0, %v158
    %160 = vmatmul.bf16.gmra.mxu0 %v121
    %v161 = vpop.f32.mrf.mxu0
    %v162 = vadd.f32 0.0, %v161
    %v163 = vpop.f32.mrf.mxu0
    %v164 = vadd.f32 0.0, %v163
    %165 = vmatmul.bf16.gmra.mxu0 %v124
    %v166 = vpop.f32.mrf.mxu0
    %v167 = vadd.f32 0.0, %v166
    %v168 = vpop.f32.mrf.mxu0
    %v169 = vadd.f32 0.0, %v168
    %170 = vmatmul.bf16.gmra.mxu0 %v127
    %v171 = vpop.f32.mrf.mxu0
    %v172 = vadd.f32 0.0, %v171
    %v173 = vpop.f32.mrf.mxu0
    %v174 = vadd.f32 0.0, %v173
    %175 = vmatmul.bf16.gmra.mxu0 %v130
    %v176 = vpop.f32.mrf.mxu0
    %v177 = vadd.f32 0.0, %v176
    %v178 = vpop.f32.mrf.mxu0
    %v179 = vadd.f32 0.0, %v178
    %180 = vdwg.mxu0
    %197 = vrot.lane.b32.xlu0 %v142, 64
    %v198 = vpop.permute.xlu0 %197
    %199 = vrot.lane.b32.xlu0 %v144, 64
    %v200 = vpop.permute.xlu0 %199
    %201 = vrot.lane.b32.xlu0 %v147, 64
    %v202 = vpop.permute.xlu0 %201
    %203 = vrot.lane.b32.xlu0 %v149, 64
    %v204 = vpop.permute.xlu0 %203
    %205 = vrot.lane.b32.xlu0 %v152, 64
    %v206 = vpop.permute.xlu0 %205
    %207 = vrot.lane.b32.xlu0 %v154, 64
    %v208 = vpop.permute.xlu0 %207
    %209 = vrot.lane.b32.xlu0 %v157, 64
    %v210 = vpop.permute.xlu0 %209
    %211 = vrot.lane.b32.xlu0 %v159, 64
    %v212 = vpop.permute.xlu0 %211
    %213 = vrot.lane.b32.xlu0 %v162, 64
    %v214 = vpop.permute.xlu0 %213
    %215 = vrot.lane.b32.xlu0 %v164, 64
    %v216 = vpop.permute.xlu0 %215
    %217 = vrot.lane.b32.xlu0 %v167, 64
    %v218 = vpop.permute.xlu0 %217
    %219 = vrot.lane.b32.xlu0 %v169, 64
    %v220 = vpop.permute.xlu0 %219
    %221 = vrot.lane.b32.xlu0 %v172, 64
    %v222 = vpop.permute.xlu0 %221
    %223 = vrot.lane.b32.xlu0 %v174, 64
    %v224 = vpop.permute.xlu0 %223
    %225 = vrot.lane.b32.xlu0 %v177, 64
    %v226 = vpop.permute.xlu0 %225
    %227 = vrot.lane.b32.xlu0 %v179, 64
    %v228 = vpop.permute.xlu0 %227
    %245 = vxpose.xlu0.b32.start [1/16] %v198, 128
    %246 = vxpose.xlu0.b32.cont [2/16] %v200, 128
    %247 = vxpose.xlu0.b32.cont [3/16] 0.0, 128
    %248 = vxpose.xlu0.b32.cont [4/16] 0.0, 128
    %249 = vxpose.xlu0.b32.cont [5/16] 0.0, 128
    %250 = vxpose.xlu0.b32.cont [6/16] 0.0, 128
    %251 = vxpose.xlu0.b32.cont [7/16] 0.0, 128
    %252 = vxpose.xlu0.b32.cont [8/16] 0.0, 128
    %253 = vxpose.xlu0.b32.cont [9/16] 0.0, 128
    %254 = vxpose.xlu0.b32.cont [10/16] 0.0, 128
    %255 = vxpose.xlu0.b32.cont [11/16] 0.0, 128
    %256 = vxpose.xlu0.b32.cont [12/16] 0.0, 128
    %257 = vxpose.xlu0.b32.cont [13/16] 0.0, 128
    %258 = vxpose.xlu0.b32.cont [14/16] 0.0, 128
    %259 = vxpose.xlu0.b32.cont [15/16] 0.0, 128
    %260 = vxpose.xlu0.b32.end [16/16] 0.0, 128
    %v261 = vpop.trf.xlu0
    %v262 = vpop.trf.xlu0
    %v263 = vpop.trf.xlu0
    %v264 = vpop.trf.xlu0
    %v265 = vpop.trf.xlu0
    %v266 = vpop.trf.xlu0
    %v267 = vpop.trf.xlu0
    %v268 = vpop.trf.xlu0
    %v269 = vpop.trf.xlu0
    %v270 = vpop.trf.xlu0
    %v271 = vpop.trf.xlu0
    %v272 = vpop.trf.xlu0
    %v273 = vpop.trf.xlu0
    %v274 = vpop.trf.xlu0
    %v275 = vpop.trf.xlu0
    %v276 = vpop.trf.xlu0
    %277 = vxpose.xlu0.b32.start [1/16] %v202, 128
    %278 = vxpose.xlu0.b32.cont [2/16] %v204, 128
    %279 = vxpose.xlu0.b32.cont [3/16] 0.0, 128
    %280 = vxpose.xlu0.b32.cont [4/16] 0.0, 128
    %281 = vxpose.xlu0.b32.cont [5/16] 0.0, 128
    %282 = vxpose.xlu0.b32.cont [6/16] 0.0, 128
    %283 = vxpose.xlu0.b32.cont [7/16] 0.0, 128
    %284 = vxpose.xlu0.b32.cont [8/16] 0.0, 128
    %285 = vxpose.xlu0.b32.cont [9/16] 0.0, 128
    %286 = vxpose.xlu0.b32.cont [10/16] 0.0, 128
    %287 = vxpose.xlu0.b32.cont [11/16] 0.0, 128
    %288 = vxpose.xlu0.b32.cont [12/16] 0.0, 128
    %289 = vxpose.xlu0.b32.cont [13/16] 0.0, 128
    %290 = vxpose.xlu0.b32.cont [14/16] 0.0, 128
    %291 = vxpose.xlu0.b32.cont [15/16] 0.0, 128
    %292 = vxpose.xlu0.b32.end [16/16] 0.0, 128
    %v293 = vpop.trf.xlu0
    %v294 = vpop.trf.xlu0
    %v295 = vpop.trf.xlu0
    %v296 = vpop.trf.xlu0
    %v297 = vpop.trf.xlu0
    %v298 = vpop.trf.xlu0
    %v299 = vpop.trf.xlu0
    %v300 = vpop.trf.xlu0
    %v301 = vpop.trf.xlu0
    %v302 = vpop.trf.xlu0
    %v303 = vpop.trf.xlu0
    %v304 = vpop.trf.xlu0
    %v305 = vpop.trf.xlu0
    %v306 = vpop.trf.xlu0
    %v307 = vpop.trf.xlu0
    %v308 = vpop.trf.xlu0
    %309 = vxpose.xlu0.b32.start [1/16] %v206, 128
    %310 = vxpose.xlu0.b32.cont [2/16] %v208, 128
    %311 = vxpose.xlu0.b32.cont [3/16] 0.0, 128
    %312 = vxpose.xlu0.b32.cont [4/16] 0.0, 128
    %313 = vxpose.xlu0.b32.cont [5/16] 0.0, 128
    %314 = vxpose.xlu0.b32.cont [6/16] 0.0, 128
    %315 = vxpose.xlu0.b32.cont [7/16] 0.0, 128
    %316 = vxpose.xlu0.b32.cont [8/16] 0.0, 128
    %317 = vxpose.xlu0.b32.cont [9/16] 0.0, 128
    %318 = vxpose.xlu0.b32.cont [10/16] 0.0, 128
    %319 = vxpose.xlu0.b32.cont [11/16] 0.0, 128
    %320 = vxpose.xlu0.b32.cont [12/16] 0.0, 128
    %321 = vxpose.xlu0.b32.cont [13/16] 0.0, 128
    %322 = vxpose.xlu0.b32.cont [14/16] 0.0, 128
    %323 = vxpose.xlu0.b32.cont [15/16] 0.0, 128
    %324 = vxpose.xlu0.b32.end [16/16] 0.0, 128
    %v325 = vpop.trf.xlu0
    %v326 = vpop.trf.xlu0
    %v327 = vpop.trf.xlu0
    %v328 = vpop.trf.xlu0
    %v329 = vpop.trf.xlu0
    %v330 = vpop.trf.xlu0
    %v331 = vpop.trf.xlu0
    %v332 = vpop.trf.xlu0
    %v333 = vpop.trf.xlu0
    %v334 = vpop.trf.xlu0
    %v335 = vpop.trf.xlu0
    %v336 = vpop.trf.xlu0
    %v337 = vpop.trf.xlu0
    %v338 = vpop.trf.xlu0
    %v339 = vpop.trf.xlu0
    %v340 = vpop.trf.xlu0
    %341 = vxpose.xlu0.b32.start [1/16] %v210, 128
    %342 = vxpose.xlu0.b32.cont [2/16] %v212, 128
    %343 = vxpose.xlu0.b32.cont [3/16] 0.0, 128
    %344 = vxpose.xlu0.b32.cont [4/16] 0.0, 128
    %345 = vxpose.xlu0.b32.cont [5/16] 0.0, 128
    %346 = vxpose.xlu0.b32.cont [6/16] 0.0, 128
    %347 = vxpose.xlu0.b32.cont [7/16] 0.0, 128
    %348 = vxpose.xlu0.b32.cont [8/16] 0.0, 128
    %349 = vxpose.xlu0.b32.cont [9/16] 0.0, 128
    %350 = vxpose.xlu0.b32.cont [10/16] 0.0, 128
    %351 = vxpose.xlu0.b32.cont [11/16] 0.0, 128
    %352 = vxpose.xlu0.b32.cont [12/16] 0.0, 128
    %353 = vxpose.xlu0.b32.cont [13/16] 0.0, 128
    %354 = vxpose.xlu0.b32.cont [14/16] 0.0, 128
    %355 = vxpose.xlu0.b32.cont [15/16] 0.0, 128
    %356 = vxpose.xlu0.b32.end [16/16] 0.0, 128
    %v357 = vpop.trf.xlu0
    %v358 = vpop.trf.xlu0
    %v359 = vpop.trf.xlu0
    %v360 = vpop.trf.xlu0
    %v361 = vpop.trf.xlu0
    %v362 = vpop.trf.xlu0
    %v363 = vpop.trf.xlu0
    %v364 = vpop.trf.xlu0
    %v365 = vpop.trf.xlu0
    %v366 = vpop.trf.xlu0
    %v367 = vpop.trf.xlu0
    %v368 = vpop.trf.xlu0
    %v369 = vpop.trf.xlu0
    %v370 = vpop.trf.xlu0
    %v371 = vpop.trf.xlu0
    %v372 = vpop.trf.xlu0
    %373 = vxpose.xlu0.b32.start [1/16] %v214, 128
    %374 = vxpose.xlu0.b32.cont [2/16] %v216, 128
    %375 = vxpose.xlu0.b32.cont [3/16] 0.0, 128
    %376 = vxpose.xlu0.b32.cont [4/16] 0.0, 128
    %377 = vxpose.xlu0.b32.cont [5/16] 0.0, 128
    %378 = vxpose.xlu0.b32.cont [6/16] 0.0, 128
    %379 = vxpose.xlu0.b32.cont [7/16] 0.0, 128
    %380 = vxpose.xlu0.b32.cont [8/16] 0.0, 128
    %381 = vxpose.xlu0.b32.cont [9/16] 0.0, 128
    %382 = vxpose.xlu0.b32.cont [10/16] 0.0, 128
    %383 = vxpose.xlu0.b32.cont [11/16] 0.0, 128
    %384 = vxpose.xlu0.b32.cont [12/16] 0.0, 128
    %385 = vxpose.xlu0.b32.cont [13/16] 0.0, 128
    %386 = vxpose.xlu0.b32.cont [14/16] 0.0, 128
    %387 = vxpose.xlu0.b32.cont [15/16] 0.0, 128
    %388 = vxpose.xlu0.b32.end [16/16] 0.0, 128
    %v389 = vpop.trf.xlu0
    %v390 = vpop.trf.xlu0
    %v391 = vpop.trf.xlu0
    %v392 = vpop.trf.xlu0
    %v393 = vpop.trf.xlu0
    %v394 = vpop.trf.xlu0
    %v395 = vpop.trf.xlu0
    %v396 = vpop.trf.xlu0
    %v397 = vpop.trf.xlu0
    %v398 = vpop.trf.xlu0
    %v399 = vpop.trf.xlu0
    %v400 = vpop.trf.xlu0
    %v401 = vpop.trf.xlu0
    %v402 = vpop.trf.xlu0
    %v403 = vpop.trf.xlu0
    %v404 = vpop.trf.xlu0
    %405 = vxpose.xlu0.b32.start [1/16] %v218, 128
    %406 = vxpose.xlu0.b32.cont [2/16] %v220, 128
    %407 = vxpose.xlu0.b32.cont [3/16] 0.0, 128
    %408 = vxpose.xlu0.b32.cont [4/16] 0.0, 128
    %409 = vxpose.xlu0.b32.cont [5/16] 0.0, 128
    %410 = vxpose.xlu0.b32.cont [6/16] 0.0, 128
    %411 = vxpose.xlu0.b32.cont [7/16] 0.0, 128
    %412 = vxpose.xlu0.b32.cont [8/16] 0.0, 128
    %413 = vxpose.xlu0.b32.cont [9/16] 0.0, 128
    %414 = vxpose.xlu0.b32.cont [10/16] 0.0, 128
    %415 = vxpose.xlu0.b32.cont [11/16] 0.0, 128
    %416 = vxpose.xlu0.b32.cont [12/16] 0.0, 128
    %417 = vxpose.xlu0.b32.cont [13/16] 0.0, 128
    %418 = vxpose.xlu0.b32.cont [14/16] 0.0, 128
    %419 = vxpose.xlu0.b32.cont [15/16] 0.0, 128
    %420 = vxpose.xlu0.b32.end [16/16] 0.0, 128
    %v421 = vpop.trf.xlu0
    %v422 = vpop.trf.xlu0
    %v423 = vpop.trf.xlu0
    %v424 = vpop.trf.xlu0
    %v425 = vpop.trf.xlu0
    %v426 = vpop.trf.xlu0
    %v427 = vpop.trf.xlu0
    %v428 = vpop.trf.xlu0
    %v429 = vpop.trf.xlu0
    %v430 = vpop.trf.xlu0
    %v431 = vpop.trf.xlu0
    %v432 = vpop.trf.xlu0
    %v433 = vpop.trf.xlu0
    %v434 = vpop.trf.xlu0
    %v435 = vpop.trf.xlu0
    %v436 = vpop.trf.xlu0
    %437 = vxpose.xlu0.b32.start [1/16] %v222, 128
    %438 = vxpose.xlu0.b32.cont [2/16] %v224, 128
    %439 = vxpose.xlu0.b32.cont [3/16] 0.0, 128
    %440 = vxpose.xlu0.b32.cont [4/16] 0.0, 128
    %441 = vxpose.xlu0.b32.cont [5/16] 0.0, 128
    %442 = vxpose.xlu0.b32.cont [6/16] 0.0, 128
    %443 = vxpose.xlu0.b32.cont [7/16] 0.0, 128
    %444 = vxpose.xlu0.b32.cont [8/16] 0.0, 128
    %445 = vxpose.xlu0.b32.cont [9/16] 0.0, 128
    %446 = vxpose.xlu0.b32.cont [10/16] 0.0, 128
    %447 = vxpose.xlu0.b32.cont [11/16] 0.0, 128
    %448 = vxpose.xlu0.b32.cont [12/16] 0.0, 128
    %449 = vxpose.xlu0.b32.cont [13/16] 0.0, 128
    %450 = vxpose.xlu0.b32.cont [14/16] 0.0, 128
    %451 = vxpose.xlu0.b32.cont [15/16] 0.0, 128
    %452 = vxpose.xlu0.b32.end [16/16] 0.0, 128
    %v453 = vpop.trf.xlu0
    %v454 = vpop.trf.xlu0
    %v455 = vpop.trf.xlu0
    %v456 = vpop.trf.xlu0
    %v457 = vpop.trf.xlu0
    %v458 = vpop.trf.xlu0
    %v459 = vpop.trf.xlu0
    %v460 = vpop.trf.xlu0
    %v461 = vpop.trf.xlu0
    %v462 = vpop.trf.xlu0
    %v463 = vpop.trf.xlu0
    %v464 = vpop.trf.xlu0
    %v465 = vpop.trf.xlu0
    %v466 = vpop.trf.xlu0
    %v467 = vpop.trf.xlu0
    %v468 = vpop.trf.xlu0
    %469 = vxpose.xlu0.b32.start [1/16] %v226, 128
    %470 = vxpose.xlu0.b32.cont [2/16] %v228, 128
    %471 = vxpose.xlu0.b32.cont [3/16] 0.0, 128
    %472 = vxpose.xlu0.b32.cont [4/16] 0.0, 128
    %473 = vxpose.xlu0.b32.cont [5/16] 0.0, 128
    %474 = vxpose.xlu0.b32.cont [6/16] 0.0, 128
    %475 = vxpose.xlu0.b32.cont [7/16] 0.0, 128
    %476 = vxpose.xlu0.b32.cont [8/16] 0.0, 128
    %477 = vxpose.xlu0.b32.cont [9/16] 0.0, 128
    %478 = vxpose.xlu0.b32.cont [10/16] 0.0, 128
    %479 = vxpose.xlu0.b32.cont [11/16] 0.0, 128
    %480 = vxpose.xlu0.b32.cont [12/16] 0.0, 128
    %481 = vxpose.xlu0.b32.cont [13/16] 0.0, 128
    %482 = vxpose.xlu0.b32.cont [14/16] 0.0, 128
    %483 = vxpose.xlu0.b32.cont [15/16] 0.0, 128
    %484 = vxpose.xlu0.b32.end [16/16] 0.0, 128
    %v485 = vpop.trf.xlu0
    %v486 = vpop.trf.xlu0
    %v487 = vpop.trf.xlu0
    %v488 = vpop.trf.xlu0
    %v489 = vpop.trf.xlu0
    %v490 = vpop.trf.xlu0
    %v491 = vpop.trf.xlu0
    %v492 = vpop.trf.xlu0
    %v493 = vpop.trf.xlu0
    %v494 = vpop.trf.xlu0
    %v495 = vpop.trf.xlu0
    %v496 = vpop.trf.xlu0
    %v497 = vpop.trf.xlu0
    %v498 = vpop.trf.xlu0
    %v499 = vpop.trf.xlu0
    %v500 = vpop.trf.xlu0
    %v509 = vrot.slane %v261, 1
    %v510 = vrot.slane %v261, 2
    %v511 = vrot.slane %v261, 3
    %v512 = vrot.slane %v293, 1
    %v513 = vrot.slane %v293, 2
    %v514 = vrot.slane %v293, 3
    %v515 = vrot.slane %v325, 1
    %v516 = vrot.slane %v325, 2
    %v517 = vrot.slane %v325, 3
    %v518 = vrot.slane %v357, 1
    %v519 = vrot.slane %v357, 2
    %v520 = vrot.slane %v357, 3
    %v521 = vrot.slane %v389, 1
    %v522 = vrot.slane %v389, 2
    %v523 = vrot.slane %v389, 3
    %v524 = vrot.slane %v421, 1
    %v525 = vrot.slane %v421, 2
    %v526 = vrot.slane %v421, 3
    %v527 = vrot.slane %v453, 1
    %v528 = vrot.slane %v453, 2
    %v529 = vrot.slane %v453, 3
    %v530 = vrot.slane %v485, 1
    %v531 = vrot.slane %v485, 2
    %v532 = vrot.slane %v485, 3
    %v533 = vperm.slane %v261, 4
    %v534 = vlaneseq
    %v535 = vshrl.u32 %v534, 7
    %537 = vset.pattern.permute.xlu0 %v535
    %538 = vperm.xlu0 %537, %v533
    %v539 = vpop.permute.xlu0 %538
    %v540 = vlaneseq
    %v541 = vshrl.u32 %v540, 7
    %v542 = vadd.s32 %v541, 8
    %543 = vset.pattern.permute.xlu0 %v542
    %544 = vperm.xlu0 %543, %v533
    %v545 = vpop.permute.xlu0 %544
    %v546 = vperm.slane %v261, 5
    %v547 = vlaneseq
    %v548 = vshrl.u32 %v547, 7
    %550 = vset.pattern.permute.xlu0 %v548
    %551 = vperm.xlu0 %550, %v546
    %v552 = vpop.permute.xlu0 %551
    %v553 = vlaneseq
    %v554 = vshrl.u32 %v553, 7
    %v555 = vadd.s32 %v554, 8
    %556 = vset.pattern.permute.xlu0 %v555
    %557 = vperm.xlu0 %556, %v546
    %v558 = vpop.permute.xlu0 %557
    %v559 = vperm.slane %v261, 6
    %v560 = vlaneseq
    %v561 = vshrl.u32 %v560, 7
    %563 = vset.pattern.permute.xlu0 %v561
    %564 = vperm.xlu0 %563, %v559
    %v565 = vpop.permute.xlu0 %564
    %v566 = vlaneseq
    %v567 = vshrl.u32 %v566, 7
    %v568 = vadd.s32 %v567, 8
    %569 = vset.pattern.permute.xlu0 %v568
    %570 = vperm.xlu0 %569, %v559
    %v571 = vpop.permute.xlu0 %570
    %v572 = vperm.slane %v261, 7
    %v573 = vlaneseq
    %v574 = vshrl.u32 %v573, 7
    %576 = vset.pattern.permute.xlu0 %v574
    %577 = vperm.xlu0 %576, %v572
    %v578 = vpop.permute.xlu0 %577
    %v579 = vlaneseq
    %v580 = vshrl.u32 %v579, 7
    %v581 = vadd.s32 %v580, 8
    %582 = vset.pattern.permute.xlu0 %v581
    %583 = vperm.xlu0 %582, %v572
    %v584 = vpop.permute.xlu0 %583
    %v585 = vperm.slane %v293, 4
    %v586 = vlaneseq
    %v587 = vshrl.u32 %v586, 7
    %589 = vset.pattern.permute.xlu0 %v587
    %590 = vperm.xlu0 %589, %v585
    %v591 = vpop.permute.xlu0 %590
    %v592 = vlaneseq
    %v593 = vshrl.u32 %v592, 7
    %v594 = vadd.s32 %v593, 8
    %595 = vset.pattern.permute.xlu0 %v594
    %596 = vperm.xlu0 %595, %v585
    %v597 = vpop.permute.xlu0 %596
    %v598 = vperm.slane %v293, 5
    %v599 = vlaneseq
    %v600 = vshrl.u32 %v599, 7
    %602 = vset.pattern.permute.xlu0 %v600
    %603 = vperm.xlu0 %602, %v598
    %v604 = vpop.permute.xlu0 %603
    %v605 = vlaneseq
    %v606 = vshrl.u32 %v605, 7
    %v607 = vadd.s32 %v606, 8
    %608 = vset.pattern.permute.xlu0 %v607
    %609 = vperm.xlu0 %608, %v598
    %v610 = vpop.permute.xlu0 %609
    %v611 = vperm.slane %v293, 6
    %v612 = vlaneseq
    %v613 = vshrl.u32 %v612, 7
    %615 = vset.pattern.permute.xlu0 %v613
    %616 = vperm.xlu0 %615, %v611
    %v617 = vpop.permute.xlu0 %616
    %v618 = vlaneseq
    %v619 = vshrl.u32 %v618, 7
    %v620 = vadd.s32 %v619, 8
    %621 = vset.pattern.permute.xlu0 %v620
    %622 = vperm.xlu0 %621, %v611
    %v623 = vpop.permute.xlu0 %622
    %v624 = vperm.slane %v293, 7
    %v625 = vlaneseq
    %v626 = vshrl.u32 %v625, 7
    %628 = vset.pattern.permute.xlu0 %v626
    %629 = vperm.xlu0 %628, %v624
    %v630 = vpop.permute.xlu0 %629
    %v631 = vlaneseq
    %v632 = vshrl.u32 %v631, 7
    %v633 = vadd.s32 %v632, 8
    %634 = vset.pattern.permute.xlu0 %v633
    %635 = vperm.xlu0 %634, %v624
    %v636 = vpop.permute.xlu0 %635
    %v637 = vperm.slane %v325, 4
    %v638 = vlaneseq
    %v639 = vshrl.u32 %v638, 7
    %641 = vset.pattern.permute.xlu0 %v639
    %642 = vperm.xlu0 %641, %v637
    %v643 = vpop.permute.xlu0 %642
    %v644 = vlaneseq
    %v645 = vshrl.u32 %v644, 7
    %v646 = vadd.s32 %v645, 8
    %647 = vset.pattern.permute.xlu0 %v646
    %648 = vperm.xlu0 %647, %v637
    %v649 = vpop.permute.xlu0 %648
    %v650 = vperm.slane %v325, 5
    %v651 = vlaneseq
    %v652 = vshrl.u32 %v651, 7
    %654 = vset.pattern.permute.xlu0 %v652
    %655 = vperm.xlu0 %654, %v650
    %v656 = vpop.permute.xlu0 %655
    %v657 = vlaneseq
    %v658 = vshrl.u32 %v657, 7
    %v659 = vadd.s32 %v658, 8
    %660 = vset.pattern.permute.xlu0 %v659
    %661 = vperm.xlu0 %660, %v650
    %v662 = vpop.permute.xlu0 %661
    %v663 = vperm.slane %v325, 6
    %v664 = vlaneseq
    %v665 = vshrl.u32 %v664, 7
    %667 = vset.pattern.permute.xlu0 %v665
    %668 = vperm.xlu0 %667, %v663
    %v669 = vpop.permute.xlu0 %668
    %v670 = vlaneseq
    %v671 = vshrl.u32 %v670, 7
    %v672 = vadd.s32 %v671, 8
    %673 = vset.pattern.permute.xlu0 %v672
    %674 = vperm.xlu0 %673, %v663
    %v675 = vpop.permute.xlu0 %674
    %v676 = vperm.slane %v325, 7
    %v677 = vlaneseq
    %v678 = vshrl.u32 %v677, 7
    %680 = vset.pattern.permute.xlu0 %v678
    %681 = vperm.xlu0 %680, %v676
    %v682 = vpop.permute.xlu0 %681
    %v683 = vlaneseq
    %v684 = vshrl.u32 %v683, 7
    %v685 = vadd.s32 %v684, 8
    %686 = vset.pattern.permute.xlu0 %v685
    %687 = vperm.xlu0 %686, %v676
    %v688 = vpop.permute.xlu0 %687
    %v689 = vperm.slane %v357, 4
    %v690 = vlaneseq
    %v691 = vshrl.u32 %v690, 7
    %693 = vset.pattern.permute.xlu0 %v691
    %694 = vperm.xlu0 %693, %v689
    %v695 = vpop.permute.xlu0 %694
    %v696 = vlaneseq
    %v697 = vshrl.u32 %v696, 7
    %v698 = vadd.s32 %v697, 8
    %699 = vset.pattern.permute.xlu0 %v698
    %700 = vperm.xlu0 %699, %v689
    %v701 = vpop.permute.xlu0 %700
    %v702 = vperm.slane %v357, 5
    %v703 = vlaneseq
    %v704 = vshrl.u32 %v703, 7
    %706 = vset.pattern.permute.xlu0 %v704
    %707 = vperm.xlu0 %706, %v702
    %v708 = vpop.permute.xlu0 %707
    %v709 = vlaneseq
    %v710 = vshrl.u32 %v709, 7
    %v711 = vadd.s32 %v710, 8
    %712 = vset.pattern.permute.xlu0 %v711
    %713 = vperm.xlu0 %712, %v702
    %v714 = vpop.permute.xlu0 %713
    %v715 = vperm.slane %v357, 6
    %v716 = vlaneseq
    %v717 = vshrl.u32 %v716, 7
    %719 = vset.pattern.permute.xlu0 %v717
    %720 = vperm.xlu0 %719, %v715
    %v721 = vpop.permute.xlu0 %720
    %v722 = vlaneseq
    %v723 = vshrl.u32 %v722, 7
    %v724 = vadd.s32 %v723, 8
    %725 = vset.pattern.permute.xlu0 %v724
    %726 = vperm.xlu0 %725, %v715
    %v727 = vpop.permute.xlu0 %726
    %v728 = vperm.slane %v357, 7
    %v729 = vlaneseq
    %v730 = vshrl.u32 %v729, 7
    %732 = vset.pattern.permute.xlu0 %v730
    %733 = vperm.xlu0 %732, %v728
    %v734 = vpop.permute.xlu0 %733
    %v735 = vlaneseq
    %v736 = vshrl.u32 %v735, 7
    %v737 = vadd.s32 %v736, 8
    %738 = vset.pattern.permute.xlu0 %v737
    %739 = vperm.xlu0 %738, %v728
    %v740 = vpop.permute.xlu0 %739
    %v741 = vperm.slane %v389, 4
    %v742 = vlaneseq
    %v743 = vshrl.u32 %v742, 7
    %745 = vset.pattern.permute.xlu0 %v743
    %746 = vperm.xlu0 %745, %v741
    %v747 = vpop.permute.xlu0 %746
    %v748 = vlaneseq
    %v749 = vshrl.u32 %v748, 7
    %v750 = vadd.s32 %v749, 8
    %751 = vset.pattern.permute.xlu0 %v750
    %752 = vperm.xlu0 %751, %v741
    %v753 = vpop.permute.xlu0 %752
    %v754 = vperm.slane %v389, 5
    %v755 = vlaneseq
    %v756 = vshrl.u32 %v755, 7
    %758 = vset.pattern.permute.xlu0 %v756
    %759 = vperm.xlu0 %758, %v754
    %v760 = vpop.permute.xlu0 %759
    %v761 = vlaneseq
    %v762 = vshrl.u32 %v761, 7
    %v763 = vadd.s32 %v762, 8
    %764 = vset.pattern.permute.xlu0 %v763
    %765 = vperm.xlu0 %764, %v754
    %v766 = vpop.permute.xlu0 %765
    %v767 = vperm.slane %v389, 6
    %v768 = vlaneseq
    %v769 = vshrl.u32 %v768, 7
    %771 = vset.pattern.permute.xlu0 %v769
    %772 = vperm.xlu0 %771, %v767
    %v773 = vpop.permute.xlu0 %772
    %v774 = vlaneseq
    %v775 = vshrl.u32 %v774, 7
    %v776 = vadd.s32 %v775, 8
    %777 = vset.pattern.permute.xlu0 %v776
    %778 = vperm.xlu0 %777, %v767
    %v779 = vpop.permute.xlu0 %778
    %v780 = vperm.slane %v389, 7
    %v781 = vlaneseq
    %v782 = vshrl.u32 %v781, 7
    %784 = vset.pattern.permute.xlu0 %v782
    %785 = vperm.xlu0 %784, %v780
    %v786 = vpop.permute.xlu0 %785
    %v787 = vlaneseq
    %v788 = vshrl.u32 %v787, 7
    %v789 = vadd.s32 %v788, 8
    %790 = vset.pattern.permute.xlu0 %v789
    %791 = vperm.xlu0 %790, %v780
    %v792 = vpop.permute.xlu0 %791
    %v793 = vperm.slane %v421, 4
    %v794 = vlaneseq
    %v795 = vshrl.u32 %v794, 7
    %797 = vset.pattern.permute.xlu0 %v795
    %798 = vperm.xlu0 %797, %v793
    %v799 = vpop.permute.xlu0 %798
    %v800 = vlaneseq
    %v801 = vshrl.u32 %v800, 7
    %v802 = vadd.s32 %v801, 8
    %803 = vset.pattern.permute.xlu0 %v802
    %804 = vperm.xlu0 %803, %v793
    %v805 = vpop.permute.xlu0 %804
    %v806 = vperm.slane %v421, 5
    %v807 = vlaneseq
    %v808 = vshrl.u32 %v807, 7
    %810 = vset.pattern.permute.xlu0 %v808
    %811 = vperm.xlu0 %810, %v806
    %v812 = vpop.permute.xlu0 %811
    %v813 = vlaneseq
    %v814 = vshrl.u32 %v813, 7
    %v815 = vadd.s32 %v814, 8
    %816 = vset.pattern.permute.xlu0 %v815
    %817 = vperm.xlu0 %816, %v806
    %v818 = vpop.permute.xlu0 %817
    %v819 = vperm.slane %v421, 6
    %v820 = vlaneseq
    %v821 = vshrl.u32 %v820, 7
    %823 = vset.pattern.permute.xlu0 %v821
    %824 = vperm.xlu0 %823, %v819
    %v825 = vpop.permute.xlu0 %824
    %v826 = vlaneseq
    %v827 = vshrl.u32 %v826, 7
    %v828 = vadd.s32 %v827, 8
    %829 = vset.pattern.permute.xlu0 %v828
    %830 = vperm.xlu0 %829, %v819
    %v831 = vpop.permute.xlu0 %830
    %v832 = vperm.slane %v421, 7
    %v833 = vlaneseq
    %v834 = vshrl.u32 %v833, 7
    %836 = vset.pattern.permute.xlu0 %v834
    %837 = vperm.xlu0 %836, %v832
    %v838 = vpop.permute.xlu0 %837
    %v839 = vlaneseq
    %v840 = vshrl.u32 %v839, 7
    %v841 = vadd.s32 %v840, 8
    %842 = vset.pattern.permute.xlu0 %v841
    %843 = vperm.xlu0 %842, %v832
    %v844 = vpop.permute.xlu0 %843
    %v845 = vperm.slane %v453, 4
    %v846 = vlaneseq
    %v847 = vshrl.u32 %v846, 7
    %849 = vset.pattern.permute.xlu0 %v847
    %850 = vperm.xlu0 %849, %v845
    %v851 = vpop.permute.xlu0 %850
    %v852 = vlaneseq
    %v853 = vshrl.u32 %v852, 7
    %v854 = vadd.s32 %v853, 8
    %855 = vset.pattern.permute.xlu0 %v854
    %856 = vperm.xlu0 %855, %v845
    %v857 = vpop.permute.xlu0 %856
    %v858 = vperm.slane %v453, 5
    %v859 = vlaneseq
    %v860 = vshrl.u32 %v859, 7
    %862 = vset.pattern.permute.xlu0 %v860
    %863 = vperm.xlu0 %862, %v858
    %v864 = vpop.permute.xlu0 %863
    %v865 = vlaneseq
    %v866 = vshrl.u32 %v865, 7
    %v867 = vadd.s32 %v866, 8
    %868 = vset.pattern.permute.xlu0 %v867
    %869 = vperm.xlu0 %868, %v858
    %v870 = vpop.permute.xlu0 %869
    %v871 = vperm.slane %v453, 6
    %v872 = vlaneseq
    %v873 = vshrl.u32 %v872, 7
    %875 = vset.pattern.permute.xlu0 %v873
    %876 = vperm.xlu0 %875, %v871
    %v877 = vpop.permute.xlu0 %876
    %v878 = vlaneseq
    %v879 = vshrl.u32 %v878, 7
    %v880 = vadd.s32 %v879, 8
    %881 = vset.pattern.permute.xlu0 %v880
    %882 = vperm.xlu0 %881, %v871
    %v883 = vpop.permute.xlu0 %882
    %v884 = vperm.slane %v453, 7
    %v885 = vlaneseq
    %v886 = vshrl.u32 %v885, 7
    %888 = vset.pattern.permute.xlu0 %v886
    %889 = vperm.xlu0 %888, %v884
    %v890 = vpop.permute.xlu0 %889
    %v891 = vlaneseq
    %v892 = vshrl.u32 %v891, 7
    %v893 = vadd.s32 %v892, 8
    %894 = vset.pattern.permute.xlu0 %v893
    %895 = vperm.xlu0 %894, %v884
    %v896 = vpop.permute.xlu0 %895
    %v897 = vperm.slane %v485, 4
    %v898 = vlaneseq
    %v899 = vshrl.u32 %v898, 7
    %901 = vset.pattern.permute.xlu0 %v899
    %902 = vperm.xlu0 %901, %v897
    %v903 = vpop.permute.xlu0 %902
    %v904 = vlaneseq
    %v905 = vshrl.u32 %v904, 7
    %v906 = vadd.s32 %v905, 8
    %907 = vset.pattern.permute.xlu0 %v906
    %908 = vperm.xlu0 %907, %v897
    %v909 = vpop.permute.xlu0 %908
    %v910 = vperm.slane %v485, 5
    %v911 = vlaneseq
    %v912 = vshrl.u32 %v911, 7
    %914 = vset.pattern.permute.xlu0 %v912
    %915 = vperm.xlu0 %914, %v910
    %v916 = vpop.permute.xlu0 %915
    %v917 = vlaneseq
    %v918 = vshrl.u32 %v917, 7
    %v919 = vadd.s32 %v918, 8
    %920 = vset.pattern.permute.xlu0 %v919
    %921 = vperm.xlu0 %920, %v910
    %v922 = vpop.permute.xlu0 %921
    %v923 = vperm.slane %v485, 6
    %v924 = vlaneseq
    %v925 = vshrl.u32 %v924, 7
    %927 = vset.pattern.permute.xlu0 %v925
    %928 = vperm.xlu0 %927, %v923
    %v929 = vpop.permute.xlu0 %928
    %v930 = vlaneseq
    %v931 = vshrl.u32 %v930, 7
    %v932 = vadd.s32 %v931, 8
    %933 = vset.pattern.permute.xlu0 %v932
    %934 = vperm.xlu0 %933, %v923
    %v935 = vpop.permute.xlu0 %934
    %v936 = vperm.slane %v485, 7
    %v937 = vlaneseq
    %v938 = vshrl.u32 %v937, 7
    %940 = vset.pattern.permute.xlu0 %v938
    %941 = vperm.xlu0 %940, %v936
    %v942 = vpop.permute.xlu0 %941
    %v943 = vlaneseq
    %v944 = vshrl.u32 %v943, 7
    %v945 = vadd.s32 %v944, 8
    %946 = vset.pattern.permute.xlu0 %v945
    %947 = vperm.xlu0 %946, %v936
    %v948 = vpop.permute.xlu0 %947
    %v949 = vperm.slane %v261, 0
    %v950 = vperm.slane %v509, 0
    %v951 = vperm.slane %v510, 0
    %v952 = vperm.slane %v511, 0
    %v953 = vperm.slane %v293, 0
    %v954 = vperm.slane %v512, 0
    %v955 = vperm.slane %v513, 0
    %v956 = vperm.slane %v514, 0
    %v957 = vperm.slane %v325, 0
    %v958 = vperm.slane %v515, 0
    %v959 = vperm.slane %v516, 0
    %v960 = vperm.slane %v517, 0
    %v961 = vperm.slane %v357, 0
    %v962 = vperm.slane %v518, 0
    %v963 = vperm.slane %v519, 0
    %v964 = vperm.slane %v520, 0
    %v965 = vperm.slane %v389, 0
    %v966 = vperm.slane %v521, 0
    %v967 = vperm.slane %v522, 0
    %v968 = vperm.slane %v523, 0
    %v969 = vperm.slane %v421, 0
    %v970 = vperm.slane %v524, 0
    %v971 = vperm.slane %v525, 0
    %v972 = vperm.slane %v526, 0
    %v973 = vperm.slane %v453, 0
    %v974 = vperm.slane %v527, 0
    %v975 = vperm.slane %v528, 0
    %v976 = vperm.slane %v529, 0
    %v977 = vperm.slane %v485, 0
    %v978 = vperm.slane %v530, 0
    %v979 = vperm.slane %v531, 0
    %v980 = vperm.slane %v532, 0
    %v1013 = vadd.f32 %v949, %v539
    %v1014 = vadd.f32 %v949, %v545
    %v1015 = vadd.f32 %v950, %v552
    %v1016 = vadd.f32 %v950, %v558
    %v1017 = vadd.f32 %v951, %v565
    %v1018 = vadd.f32 %v951, %v571
    %v1019 = vadd.f32 %v952, %v578
    %v1020 = vadd.f32 %v952, %v584
    %v1021 = vadd.f32 %v953, %v591
    %v1022 = vadd.f32 %v953, %v597
    %v1023 = vadd.f32 %v954, %v604
    %v1024 = vadd.f32 %v954, %v610
    %v1025 = vadd.f32 %v955, %v617
    %v1026 = vadd.f32 %v955, %v623
    %v1027 = vadd.f32 %v956, %v630
    %v1028 = vadd.f32 %v956, %v636
    %v1029 = vadd.f32 %v957, %v643
    %v1030 = vadd.f32 %v957, %v649
    %v1031 = vadd.f32 %v958, %v656
    %v1032 = vadd.f32 %v958, %v662
    %v1033 = vadd.f32 %v959, %v669
    %v1034 = vadd.f32 %v959, %v675
    %v1035 = vadd.f32 %v960, %v682
    %v1036 = vadd.f32 %v960, %v688
    %v1037 = vadd.f32 %v961, %v695
    %v1038 = vadd.f32 %v961, %v701
    %v1039 = vadd.f32 %v962, %v708
    %v1040 = vadd.f32 %v962, %v714
    %v1041 = vadd.f32 %v963, %v721
    %v1042 = vadd.f32 %v963, %v727
    %v1043 = vadd.f32 %v964, %v734
    %v1044 = vadd.f32 %v964, %v740
    %v1045 = vadd.f32 %v965, %v747
    %v1046 = vadd.f32 %v965, %v753
    %v1047 = vadd.f32 %v966, %v760
    %v1048 = vadd.f32 %v966, %v766
    %v1049 = vadd.f32 %v967, %v773
    %v1050 = vadd.f32 %v967, %v779
    %v1051 = vadd.f32 %v968, %v786
    %v1052 = vadd.f32 %v968, %v792
    %v1053 = vadd.f32 %v969, %v799
    %v1054 = vadd.f32 %v969, %v805
    %v1055 = vadd.f32 %v970, %v812
    %v1056 = vadd.f32 %v970, %v818
    %v1057 = vadd.f32 %v971, %v825
    %v1058 = vadd.f32 %v971, %v831
    %v1059 = vadd.f32 %v972, %v838
    %v1060 = vadd.f32 %v972, %v844
    %v1061 = vadd.f32 %v973, %v851
    %v1062 = vadd.f32 %v973, %v857
    %v1063 = vadd.f32 %v974, %v864
    %v1064 = vadd.f32 %v974, %v870
    %v1065 = vadd.f32 %v975, %v877
    %v1066 = vadd.f32 %v975, %v883
    %v1067 = vadd.f32 %v976, %v890
    %v1068 = vadd.f32 %v976, %v896
    %v1069 = vadd.f32 %v977, %v903
    %v1070 = vadd.f32 %v977, %v909
    %v1071 = vadd.f32 %v978, %v916
    %v1072 = vadd.f32 %v978, %v922
    %v1073 = vadd.f32 %v979, %v929
    %v1074 = vadd.f32 %v979, %v935
    %v1075 = vadd.f32 %v980, %v942
    %v1076 = vadd.f32 %v980, %v948
    %vm1077 = vcmp.gt.f32.partialorder %v1013, 0.0
    %vm1078 = vcmp.gt.f32.partialorder %v1014, 0.0
    %vm1079 = vcmp.gt.f32.partialorder %v1015, 0.0
    %vm1080 = vcmp.gt.f32.partialorder %v1016, 0.0
    %vm1081 = vcmp.gt.f32.partialorder %v1017, 0.0
    %vm1082 = vcmp.gt.f32.partialorder %v1018, 0.0
    %vm1083 = vcmp.gt.f32.partialorder %v1019, 0.0
    %vm1084 = vcmp.gt.f32.partialorder %v1020, 0.0
    %vm1085 = vcmp.gt.f32.partialorder %v1021, 0.0
    %vm1086 = vcmp.gt.f32.partialorder %v1022, 0.0
    %vm1087 = vcmp.gt.f32.partialorder %v1023, 0.0
    %vm1088 = vcmp.gt.f32.partialorder %v1024, 0.0
    %vm1089 = vcmp.gt.f32.partialorder %v1025, 0.0
    %vm1090 = vcmp.gt.f32.partialorder %v1026, 0.0
    %vm1091 = vcmp.gt.f32.partialorder %v1027, 0.0
    %vm1092 = vcmp.gt.f32.partialorder %v1028, 0.0
    %vm1093 = vcmp.gt.f32.partialorder %v1029, 0.0
    %vm1094 = vcmp.gt.f32.partialorder %v1030, 0.0
    %vm1095 = vcmp.gt.f32.partialorder %v1031, 0.0
    %vm1096 = vcmp.gt.f32.partialorder %v1032, 0.0
    %vm1097 = vcmp.gt.f32.partialorder %v1033, 0.0
    %vm1098 = vcmp.gt.f32.partialorder %v1034, 0.0
    %vm1099 = vcmp.gt.f32.partialorder %v1035, 0.0
    %vm1100 = vcmp.gt.f32.partialorder %v1036, 0.0
    %vm1101 = vcmp.gt.f32.partialorder %v1037, 0.0
    %vm1102 = vcmp.gt.f32.partialorder %v1038, 0.0
    %vm1103 = vcmp.gt.f32.partialorder %v1039, 0.0
    %vm1104 = vcmp.gt.f32.partialorder %v1040, 0.0
    %vm1105 = vcmp.gt.f32.partialorder %v1041, 0.0
    %vm1106 = vcmp.gt.f32.partialorder %v1042, 0.0
    %vm1107 = vcmp.gt.f32.partialorder %v1043, 0.0
    %vm1108 = vcmp.gt.f32.partialorder %v1044, 0.0
    %vm1109 = vcmp.gt.f32.partialorder %v1045, 0.0
    %vm1110 = vcmp.gt.f32.partialorder %v1046, 0.0
    %vm1111 = vcmp.gt.f32.partialorder %v1047, 0.0
    %vm1112 = vcmp.gt.f32.partialorder %v1048, 0.0
    %vm1113 = vcmp.gt.f32.partialorder %v1049, 0.0
    %vm1114 = vcmp.gt.f32.partialorder %v1050, 0.0
    %vm1115 = vcmp.gt.f32.partialorder %v1051, 0.0
    %vm1116 = vcmp.gt.f32.partialorder %v1052, 0.0
    %vm1117 = vcmp.gt.f32.partialorder %v1053, 0.0
    %vm1118 = vcmp.gt.f32.partialorder %v1054, 0.0
    %vm1119 = vcmp.gt.f32.partialorder %v1055, 0.0
    %vm1120 = vcmp.gt.f32.partialorder %v1056, 0.0
    %vm1121 = vcmp.gt.f32.partialorder %v1057, 0.0
    %vm1122 = vcmp.gt.f32.partialorder %v1058, 0.0
    %vm1123 = vcmp.gt.f32.partialorder %v1059, 0.0
    %vm1124 = vcmp.gt.f32.partialorder %v1060, 0.0
    %vm1125 = vcmp.gt.f32.partialorder %v1061, 0.0
    %vm1126 = vcmp.gt.f32.partialorder %v1062, 0.0
    %vm1127 = vcmp.gt.f32.partialorder %v1063, 0.0
    %vm1128 = vcmp.gt.f32.partialorder %v1064, 0.0
    %vm1129 = vcmp.gt.f32.partialorder %v1065, 0.0
    %vm1130 = vcmp.gt.f32.partialorder %v1066, 0.0
    %vm1131 = vcmp.gt.f32.partialorder %v1067, 0.0
    %vm1132 = vcmp.gt.f32.partialorder %v1068, 0.0
    %vm1133 = vcmp.gt.f32.partialorder %v1069, 0.0
    %vm1134 = vcmp.gt.f32.partialorder %v1070, 0.0
    %vm1135 = vcmp.gt.f32.partialorder %v1071, 0.0
    %vm1136 = vcmp.gt.f32.partialorder %v1072, 0.0
    %vm1137 = vcmp.gt.f32.partialorder %v1073, 0.0
    %vm1138 = vcmp.gt.f32.partialorder %v1074, 0.0
    %vm1139 = vcmp.gt.f32.partialorder %v1075, 0.0
    %vm1140 = vcmp.gt.f32.partialorder %v1076, 0.0
    %v1141 = vmul.f32 %v1013, 0.2
    %v1142 = vmul.f32 %v1014, 0.2
    %v1143 = vmul.f32 %v1015, 0.2
    %v1144 = vmul.f32 %v1016, 0.2
    %v1145 = vmul.f32 %v1017, 0.2
    %v1146 = vmul.f32 %v1018, 0.2
    %v1147 = vmul.f32 %v1019, 0.2
    %v1148 = vmul.f32 %v1020, 0.2
    %v1149 = vmul.f32 %v1021, 0.2
    %v1150 = vmul.f32 %v1022, 0.2
    %v1151 = vmul.f32 %v1023, 0.2
    %v1152 = vmul.f32 %v1024, 0.2
    %v1153 = vmul.f32 %v1025, 0.2
    %v1154 = vmul.f32 %v1026, 0.2
    %v1155 = vmul.f32 %v1027, 0.2
    %v1156 = vmul.f32 %v1028, 0.2
    %v1157 = vmul.f32 %v1029, 0.2
    %v1158 = vmul.f32 %v1030, 0.2
    %v1159 = vmul.f32 %v1031, 0.2
    %v1160 = vmul.f32 %v1032, 0.2
    %v1161 = vmul.f32 %v1033, 0.2
    %v1162 = vmul.f32 %v1034, 0.2
    %v1163 = vmul.f32 %v1035, 0.2
    %v1164 = vmul.f32 %v1036, 0.2
    %v1165 = vmul.f32 %v1037, 0.2
    %v1166 = vmul.f32 %v1038, 0.2
    %v1167 = vmul.f32 %v1039, 0.2
    %v1168 = vmul.f32 %v1040, 0.2
    %v1169 = vmul.f32 %v1041, 0.2
    %v1170 = vmul.f32 %v1042, 0.2
    %v1171 = vmul.f32 %v1043, 0.2
    %v1172 = vmul.f32 %v1044, 0.2
    %v1173 = vmul.f32 %v1045, 0.2
    %v1174 = vmul.f32 %v1046, 0.2
    %v1175 = vmul.f32 %v1047, 0.2
    %v1176 = vmul.f32 %v1048, 0.2
    %v1177 = vmul.f32 %v1049, 0.2
    %v1178 = vmul.f32 %v1050, 0.2
    %v1179 = vmul.f32 %v1051, 0.2
    %v1180 = vmul.f32 %v1052, 0.2
    %v1181 = vmul.f32 %v1053, 0.2
    %v1182 = vmul.f32 %v1054, 0.2
    %v1183 = vmul.f32 %v1055, 0.2
    %v1184 = vmul.f32 %v1056, 0.2
    %v1185 = vmul.f32 %v1057, 0.2
    %v1186 = vmul.f32 %v1058, 0.2
    %v1187 = vmul.f32 %v1059, 0.2
    %v1188 = vmul.f32 %v1060, 0.2
    %v1189 = vmul.f32 %v1061, 0.2
    %v1190 = vmul.f32 %v1062, 0.2
    %v1191 = vmul.f32 %v1063, 0.2
    %v1192 = vmul.f32 %v1064, 0.2
    %v1193 = vmul.f32 %v1065, 0.2
    %v1194 = vmul.f32 %v1066, 0.2
    %v1195 = vmul.f32 %v1067, 0.2
    %v1196 = vmul.f32 %v1068, 0.2
    %v1197 = vmul.f32 %v1069, 0.2
    %v1198 = vmul.f32 %v1070, 0.2
    %v1199 = vmul.f32 %v1071, 0.2
    %v1200 = vmul.f32 %v1072, 0.2
    %v1201 = vmul.f32 %v1073, 0.2
    %v1202 = vmul.f32 %v1074, 0.2
    %v1203 = vmul.f32 %v1075, 0.2
    %v1204 = vmul.f32 %v1076, 0.2
    %v1205 = vsel %vm1077, %v1013, %v1141
    %v1206 = vsel %vm1078, %v1014, %v1142
    %v1207 = vsel %vm1079, %v1015, %v1143
    %v1208 = vsel %vm1080, %v1016, %v1144
    %v1209 = vsel %vm1081, %v1017, %v1145
    %v1210 = vsel %vm1082, %v1018, %v1146
    %v1211 = vsel %vm1083, %v1019, %v1147
    %v1212 = vsel %vm1084, %v1020, %v1148
    %v1213 = vsel %vm1085, %v1021, %v1149
    %v1214 = vsel %vm1086, %v1022, %v1150
    %v1215 = vsel %vm1087, %v1023, %v1151
    %v1216 = vsel %vm1088, %v1024, %v1152
    %v1217 = vsel %vm1089, %v1025, %v1153
    %v1218 = vsel %vm1090, %v1026, %v1154
    %v1219 = vsel %vm1091, %v1027, %v1155
    %v1220 = vsel %vm1092, %v1028, %v1156
    %v1221 = vsel %vm1093, %v1029, %v1157
    %v1222 = vsel %vm1094, %v1030, %v1158
    %v1223 = vsel %vm1095, %v1031, %v1159
    %v1224 = vsel %vm1096, %v1032, %v1160
    %v1225 = vsel %vm1097, %v1033, %v1161
    %v1226 = vsel %vm1098, %v1034, %v1162
    %v1227 = vsel %vm1099, %v1035, %v1163
    %v1228 = vsel %vm1100, %v1036, %v1164
    %v1229 = vsel %vm1101, %v1037, %v1165
    %v1230 = vsel %vm1102, %v1038, %v1166
    %v1231 = vsel %vm1103, %v1039, %v1167
    %v1232 = vsel %vm1104, %v1040, %v1168
    %v1233 = vsel %vm1105, %v1041, %v1169
    %v1234 = vsel %vm1106, %v1042, %v1170
    %v1235 = vsel %vm1107, %v1043, %v1171
    %v1236 = vsel %vm1108, %v1044, %v1172
    %v1237 = vsel %vm1109, %v1045, %v1173
    %v1238 = vsel %vm1110, %v1046, %v1174
    %v1239 = vsel %vm1111, %v1047, %v1175
    %v1240 = vsel %vm1112, %v1048, %v1176
    %v1241 = vsel %vm1113, %v1049, %v1177
    %v1242 = vsel %vm1114, %v1050, %v1178
    %v1243 = vsel %vm1115, %v1051, %v1179
    %v1244 = vsel %vm1116, %v1052, %v1180
    %v1245 = vsel %vm1117, %v1053, %v1181
    %v1246 = vsel %vm1118, %v1054, %v1182
    %v1247 = vsel %vm1119, %v1055, %v1183
    %v1248 = vsel %vm1120, %v1056, %v1184
    %v1249 = vsel %vm1121, %v1057, %v1185
    %v1250 = vsel %vm1122, %v1058, %v1186
    %v1251 = vsel %vm1123, %v1059, %v1187
    %v1252 = vsel %vm1124, %v1060, %v1188
    %v1253 = vsel %vm1125, %v1061, %v1189
    %v1254 = vsel %vm1126, %v1062, %v1190
    %v1255 = vsel %vm1127, %v1063, %v1191
    %v1256 = vsel %vm1128, %v1064, %v1192
    %v1257 = vsel %vm1129, %v1065, %v1193
    %v1258 = vsel %vm1130, %v1066, %v1194
    %v1259 = vsel %vm1131, %v1067, %v1195
    %v1260 = vsel %vm1132, %v1068, %v1196
    %v1261 = vsel %vm1133, %v1069, %v1197
    %v1262 = vsel %vm1134, %v1070, %v1198
    %v1263 = vsel %vm1135, %v1071, %v1199
    %v1264 = vsel %vm1136, %v1072, %v1200
    %v1265 = vsel %vm1137, %v1073, %v1201
    %v1266 = vsel %vm1138, %v1074, %v1202
    %v1267 = vsel %vm1139, %v1075, %v1203
    %v1268 = vsel %vm1140, %v1076, %v1204
    %v1269 = vld [vmem:[#allocation2] sm:$0xff]
    %v1270 = vld [vmem:[#allocation2 + $0x8] sm:$0xff]
    %v1271 = vld [vmem:[#allocation2 + $0x10] sm:$0xff]
    %v1272 = vld [vmem:[#allocation2 + $0x18] sm:$0xff]
    %v1273 = vld [vmem:[#allocation2 + $0x20] sm:$0xff]
    %v1274 = vld [vmem:[#allocation2 + $0x28] sm:$0xff]
    %v1275 = vld [vmem:[#allocation2 + $0x30] sm:$0xff]
    %v1276 = vld [vmem:[#allocation2 + $0x38] sm:$0xff]
    %v1277 = vld [vmem:[#allocation2 + $0x40] sm:$0xff]
    %v1278 = vld [vmem:[#allocation2 + $0x48] sm:$0xff]
    %v1279 = vld [vmem:[#allocation2 + $0x50] sm:$0xff]
    %v1280 = vld [vmem:[#allocation2 + $0x58] sm:$0xff]
    %v1281 = vld [vmem:[#allocation2 + $0x60] sm:$0xff]
    %v1282 = vld [vmem:[#allocation2 + $0x68] sm:$0xff]
    %v1283 = vld [vmem:[#allocation2 + $0x70] sm:$0xff]
    %v1284 = vld [vmem:[#allocation2 + $0x78] sm:$0xff]
    %v1285 = vld [vmem:[#allocation2 + $0x80] sm:$0xff]
    %v1286 = vld [vmem:[#allocation2 + $0x88] sm:$0xff]
    %v1287 = vld [vmem:[#allocation2 + $0x90] sm:$0xff]
    %v1288 = vld [vmem:[#allocation2 + $0x98] sm:$0xff]
    %v1289 = vld [vmem:[#allocation2 + $0xa0] sm:$0xff]
    %v1290 = vld [vmem:[#allocation2 + $0xa8] sm:$0xff]
    %v1291 = vld [vmem:[#allocation2 + $0xb0] sm:$0xff]
    %v1292 = vld [vmem:[#allocation2 + $0xb8] sm:$0xff]
    %v1293 = vld [vmem:[#allocation2 + $0xc0] sm:$0xff]
    %v1294 = vld [vmem:[#allocation2 + $0xc8] sm:$0xff]
    %v1295 = vld [vmem:[#allocation2 + $0xd0] sm:$0xff]
    %v1296 = vld [vmem:[#allocation2 + $0xd8] sm:$0xff]
    %v1297 = vld [vmem:[#allocation2 + $0xe0] sm:$0xff]
    %v1298 = vld [vmem:[#allocation2 + $0xe8] sm:$0xff]
    %v1299 = vld [vmem:[#allocation2 + $0xf0] sm:$0xff]
    %v1300 = vld [vmem:[#allocation2 + $0xf8] sm:$0xff]
    %v1301 = vld [vmem:[#allocation2 + $0x100] sm:$0xff]
    %v1302 = vld [vmem:[#allocation2 + $0x108] sm:$0xff]
    %v1303 = vld [vmem:[#allocation2 + $0x110] sm:$0xff]
    %v1304 = vld [vmem:[#allocation2 + $0x118] sm:$0xff]
    %v1305 = vld [vmem:[#allocation2 + $0x120] sm:$0xff]
    %v1306 = vld [vmem:[#allocation2 + $0x128] sm:$0xff]
    %v1307 = vld [vmem:[#allocation2 + $0x130] sm:$0xff]
    %v1308 = vld [vmem:[#allocation2 + $0x138] sm:$0xff]
    %v1309 = vld [vmem:[#allocation2 + $0x140] sm:$0xff]
    %v1310 = vld [vmem:[#allocation2 + $0x148] sm:$0xff]
    %v1311 = vld [vmem:[#allocation2 + $0x150] sm:$0xff]
    %v1312 = vld [vmem:[#allocation2 + $0x158] sm:$0xff]
    %v1313 = vld [vmem:[#allocation2 + $0x160] sm:$0xff]
    %v1314 = vld [vmem:[#allocation2 + $0x168] sm:$0xff]
    %v1315 = vld [vmem:[#allocation2 + $0x170] sm:$0xff]
    %v1316 = vld [vmem:[#allocation2 + $0x178] sm:$0xff]
    %v1317 = vld [vmem:[#allocation2 + $0x180] sm:$0xff]
    %v1318 = vld [vmem:[#allocation2 + $0x188] sm:$0xff]
    %v1319 = vld [vmem:[#allocation2 + $0x190] sm:$0xff]
    %v1320 = vld [vmem:[#allocation2 + $0x198] sm:$0xff]
    %v1321 = vld [vmem:[#allocation2 + $0x1a0] sm:$0xff]
    %v1322 = vld [vmem:[#allocation2 + $0x1a8] sm:$0xff]
    %v1323 = vld [vmem:[#allocation2 + $0x1b0] sm:$0xff]
    %v1324 = vld [vmem:[#allocation2 + $0x1b8] sm:$0xff]
    %v1325 = vld [vmem:[#allocation2 + $0x1c0] sm:$0xff]
    %v1326 = vld [vmem:[#allocation2 + $0x1c8] sm:$0xff]
    %v1327 = vld [vmem:[#allocation2 + $0x1d0] sm:$0xff]
    %v1328 = vld [vmem:[#allocation2 + $0x1d8] sm:$0xff]
    %v1329 = vld [vmem:[#allocation2 + $0x1e0] sm:$0xff]
    %v1330 = vld [vmem:[#allocation2 + $0x1e8] sm:$0xff]
    %v1331 = vld [vmem:[#allocation2 + $0x1f0] sm:$0xff]
    %v1332 = vld [vmem:[#allocation2 + $0x1f8] sm:$0xff]
    %v1333 = vadd.f32 %v1205, %v1269
    %v1334 = vadd.f32 %v1206, %v1270
    %v1335 = vadd.f32 %v1207, %v1271
    %v1336 = vadd.f32 %v1208, %v1272
    %v1337 = vadd.f32 %v1209, %v1273
    %v1338 = vadd.f32 %v1210, %v1274
    %v1339 = vadd.f32 %v1211, %v1275
    %v1340 = vadd.f32 %v1212, %v1276
    %v1341 = vadd.f32 %v1213, %v1277
    %v1342 = vadd.f32 %v1214, %v1278
    %v1343 = vadd.f32 %v1215, %v1279
    %v1344 = vadd.f32 %v1216, %v1280
    %v1345 = vadd.f32 %v1217, %v1281
    %v1346 = vadd.f32 %v1218, %v1282
    %v1347 = vadd.f32 %v1219, %v1283
    %v1348 = vadd.f32 %v1220, %v1284
    %v1349 = vadd.f32 %v1221, %v1285
    %v1350 = vadd.f32 %v1222, %v1286
    %v1351 = vadd.f32 %v1223, %v1287
    %v1352 = vadd.f32 %v1224, %v1288
    %v1353 = vadd.f32 %v1225, %v1289
    %v1354 = vadd.f32 %v1226, %v1290
    %v1355 = vadd.f32 %v1227, %v1291
    %v1356 = vadd.f32 %v1228, %v1292
    %v1357 = vadd.f32 %v1229, %v1293
    %v1358 = vadd.f32 %v1230, %v1294
    %v1359 = vadd.f32 %v1231, %v1295
    %v1360 = vadd.f32 %v1232, %v1296
    %v1361 = vadd.f32 %v1233, %v1297
    %v1362 = vadd.f32 %v1234, %v1298
    %v1363 = vadd.f32 %v1235, %v1299
    %v1364 = vadd.f32 %v1236, %v1300
    %v1365 = vadd.f32 %v1237, %v1301
    %v1366 = vadd.f32 %v1238, %v1302
    %v1367 = vadd.f32 %v1239, %v1303
    %v1368 = vadd.f32 %v1240, %v1304
    %v1369 = vadd.f32 %v1241, %v1305
    %v1370 = vadd.f32 %v1242, %v1306
    %v1371 = vadd.f32 %v1243, %v1307
    %v1372 = vadd.f32 %v1244, %v1308
    %v1373 = vadd.f32 %v1245, %v1309
    %v1374 = vadd.f32 %v1246, %v1310
    %v1375 = vadd.f32 %v1247, %v1311
    %v1376 = vadd.f32 %v1248, %v1312
    %v1377 = vadd.f32 %v1249, %v1313
    %v1378 = vadd.f32 %v1250, %v1314
    %v1379 = vadd.f32 %v1251, %v1315
    %v1380 = vadd.f32 %v1252, %v1316
    %v1381 = vadd.f32 %v1253, %v1317
    %v1382 = vadd.f32 %v1254, %v1318
    %v1383 = vadd.f32 %v1255, %v1319
    %v1384 = vadd.f32 %v1256, %v1320
    %v1385 = vadd.f32 %v1257, %v1321
    %v1386 = vadd.f32 %v1258, %v1322
    %v1387 = vadd.f32 %v1259, %v1323
    %v1388 = vadd.f32 %v1260, %v1324
    %v1389 = vadd.f32 %v1261, %v1325
    %v1390 = vadd.f32 %v1262, %v1326
    %v1391 = vadd.f32 %v1263, %v1327
    %v1392 = vadd.f32 %v1264, %v1328
    %v1393 = vadd.f32 %v1265, %v1329
    %v1394 = vadd.f32 %v1266, %v1330
    %v1395 = vadd.f32 %v1267, %v1331
    %v1396 = vadd.f32 %v1268, %v1332
    %vm1397 = vcmask 130048
    %v1398 = vsel %vm1397, %v1333, -inf
    %1399 = vmax.xlane.f32.xlu0 %v1398
    %v1400 = vpop.xlane.xlu0 %1399
    %v1401 = vsel %vm1397, %v1334, -inf
    %1402 = vmax.xlane.f32.xlu0 %v1401
    %v1403 = vpop.xlane.xlu0 %1402
    %v1404 = vsel %vm1397, %v1335, -inf
    %1405 = vmax.xlane.f32.xlu0 %v1404
    %v1406 = vpop.xlane.xlu0 %1405
    %v1407 = vsel %vm1397, %v1336, -inf
    %1408 = vmax.xlane.f32.xlu0 %v1407
    %v1409 = vpop.xlane.xlu0 %1408
    %v1410 = vsel %vm1397, %v1337, -inf
    %1411 = vmax.xlane.f32.xlu0 %v1410
    %v1412 = vpop.xlane.xlu0 %1411
    %v1413 = vsel %vm1397, %v1338, -inf
    %1414 = vmax.xlane.f32.xlu0 %v1413
    %v1415 = vpop.xlane.xlu0 %1414
    %v1416 = vsel %vm1397, %v1339, -inf
    %1417 = vmax.xlane.f32.xlu0 %v1416
    %v1418 = vpop.xlane.xlu0 %1417
    %v1419 = vsel %vm1397, %v1340, -inf
    %1420 = vmax.xlane.f32.xlu0 %v1419
    %v1421 = vpop.xlane.xlu0 %1420
    %v1422 = vsel %vm1397, %v1341, -inf
    %1423 = vmax.xlane.f32.xlu0 %v1422
    %v1424 = vpop.xlane.xlu0 %1423
    %v1425 = vsel %vm1397, %v1342, -inf
    %1426 = vmax.xlane.f32.xlu0 %v1425
    %v1427 = vpop.xlane.xlu0 %1426
    %v1428 = vsel %vm1397, %v1343, -inf
    %1429 = vmax.xlane.f32.xlu0 %v1428
    %v1430 = vpop.xlane.xlu0 %1429
    %v1431 = vsel %vm1397, %v1344, -inf
    %1432 = vmax.xlane.f32.xlu0 %v1431
    %v1433 = vpop.xlane.xlu0 %1432
    %v1434 = vsel %vm1397, %v1345, -inf
    %1435 = vmax.xlane.f32.xlu0 %v1434
    %v1436 = vpop.xlane.xlu0 %1435
    %v1437 = vsel %vm1397, %v1346, -inf
    %1438 = vmax.xlane.f32.xlu0 %v1437
    %v1439 = vpop.xlane.xlu0 %1438
    %v1440 = vsel %vm1397, %v1347, -inf
    %1441 = vmax.xlane.f32.xlu0 %v1440
    %v1442 = vpop.xlane.xlu0 %1441
    %v1443 = vsel %vm1397, %v1348, -inf
    %1444 = vmax.xlane.f32.xlu0 %v1443
    %v1445 = vpop.xlane.xlu0 %1444
    %v1446 = vsel %vm1397, %v1349, -inf
    %1447 = vmax.xlane.f32.xlu0 %v1446
    %v1448 = vpop.xlane.xlu0 %1447
    %v1449 = vsel %vm1397, %v1350, -inf
    %1450 = vmax.xlane.f32.xlu0 %v1449
    %v1451 = vpop.xlane.xlu0 %1450
    %v1452 = vsel %vm1397, %v1351, -inf
    %1453 = vmax.xlane.f32.xlu0 %v1452
    %v1454 = vpop.xlane.xlu0 %1453
    %v1455 = vsel %vm1397, %v1352, -inf
    %1456 = vmax.xlane.f32.xlu0 %v1455
    %v1457 = vpop.xlane.xlu0 %1456
    %v1458 = vsel %vm1397, %v1353, -inf
    %1459 = vmax.xlane.f32.xlu0 %v1458
    %v1460 = vpop.xlane.xlu0 %1459
    %v1461 = vsel %vm1397, %v1354, -inf
    %1462 = vmax.xlane.f32.xlu0 %v1461
    %v1463 = vpop.xlane.xlu0 %1462
    %v1464 = vsel %vm1397, %v1355, -inf
    %1465 = vmax.xlane.f32.xlu0 %v1464
    %v1466 = vpop.xlane.xlu0 %1465
    %v1467 = vsel %vm1397, %v1356, -inf
    %1468 = vmax.xlane.f32.xlu0 %v1467
    %v1469 = vpop.xlane.xlu0 %1468
    %v1470 = vsel %vm1397, %v1357, -inf
    %1471 = vmax.xlane.f32.xlu0 %v1470
    %v1472 = vpop.xlane.xlu0 %1471
    %v1473 = vsel %vm1397, %v1358, -inf
    %1474 = vmax.xlane.f32.xlu0 %v1473
    %v1475 = vpop.xlane.xlu0 %1474
    %v1476 = vsel %vm1397, %v1359, -inf
    %1477 = vmax.xlane.f32.xlu0 %v1476
    %v1478 = vpop.xlane.xlu0 %1477
    %v1479 = vsel %vm1397, %v1360, -inf
    %1480 = vmax.xlane.f32.xlu0 %v1479
    %v1481 = vpop.xlane.xlu0 %1480
    %v1482 = vsel %vm1397, %v1361, -inf
    %1483 = vmax.xlane.f32.xlu0 %v1482
    %v1484 = vpop.xlane.xlu0 %1483
    %v1485 = vsel %vm1397, %v1362, -inf
    %1486 = vmax.xlane.f32.xlu0 %v1485
    %v1487 = vpop.xlane.xlu0 %1486
    %v1488 = vsel %vm1397, %v1363, -inf
    %1489 = vmax.xlane.f32.xlu0 %v1488
    %v1490 = vpop.xlane.xlu0 %1489
    %v1491 = vsel %vm1397, %v1364, -inf
    %1492 = vmax.xlane.f32.xlu0 %v1491
    %v1493 = vpop.xlane.xlu0 %1492
    %v1494 = vsel %vm1397, %v1365, -inf
    %1495 = vmax.xlane.f32.xlu0 %v1494
    %v1496 = vpop.xlane.xlu0 %1495
    %v1497 = vsel %vm1397, %v1366, -inf
    %1498 = vmax.xlane.f32.xlu0 %v1497
    %v1499 = vpop.xlane.xlu0 %1498
    %v1500 = vsel %vm1397, %v1367, -inf
    %1501 = vmax.xlane.f32.xlu0 %v1500
    %v1502 = vpop.xlane.xlu0 %1501
    %v1503 = vsel %vm1397, %v1368, -inf
    %1504 = vmax.xlane.f32.xlu0 %v1503
    %v1505 = vpop.xlane.xlu0 %1504
    %v1506 = vsel %vm1397, %v1369, -inf
    %1507 = vmax.xlane.f32.xlu0 %v1506
    %v1508 = vpop.xlane.xlu0 %1507
    %v1509 = vsel %vm1397, %v1370, -inf
    %1510 = vmax.xlane.f32.xlu0 %v1509
    %v1511 = vpop.xlane.xlu0 %1510
    %v1512 = vsel %vm1397, %v1371, -inf
    %1513 = vmax.xlane.f32.xlu0 %v1512
    %v1514 = vpop.xlane.xlu0 %1513
    %v1515 = vsel %vm1397, %v1372, -inf
    %1516 = vmax.xlane.f32.xlu0 %v1515
    %v1517 = vpop.xlane.xlu0 %1516
    %v1518 = vsel %vm1397, %v1373, -inf
    %1519 = vmax.xlane.f32.xlu0 %v1518
    %v1520 = vpop.xlane.xlu0 %1519
    %v1521 = vsel %vm1397, %v1374, -inf
    %1522 = vmax.xlane.f32.xlu0 %v1521
    %v1523 = vpop.xlane.xlu0 %1522
    %v1524 = vsel %vm1397, %v1375, -inf
    %1525 = vmax.xlane.f32.xlu0 %v1524
    %v1526 = vpop.xlane.xlu0 %1525
    %v1527 = vsel %vm1397, %v1376, -inf
    %1528 = vmax.xlane.f32.xlu0 %v1527
    %v1529 = vpop.xlane.xlu0 %1528
    %v1530 = vsel %vm1397, %v1377, -inf
    %1531 = vmax.xlane.f32.xlu0 %v1530
    %v1532 = vpop.xlane.xlu0 %1531
    %v1533 = vsel %vm1397, %v1378, -inf
    %1534 = vmax.xlane.f32.xlu0 %v1533
    %v1535 = vpop.xlane.xlu0 %1534
    %v1536 = vsel %vm1397, %v1379, -inf
    %1537 = vmax.xlane.f32.xlu0 %v1536
    %v1538 = vpop.xlane.xlu0 %1537
    %v1539 = vsel %vm1397, %v1380, -inf
    %1540 = vmax.xlane.f32.xlu0 %v1539
    %v1541 = vpop.xlane.xlu0 %1540
    %v1542 = vsel %vm1397, %v1381, -inf
    %1543 = vmax.xlane.f32.xlu0 %v1542
    %v1544 = vpop.xlane.xlu0 %1543
    %v1545 = vsel %vm1397, %v1382, -inf
    %1546 = vmax.xlane.f32.xlu0 %v1545
    %v1547 = vpop.xlane.xlu0 %1546
    %v1548 = vsel %vm1397, %v1383, -inf
    %1549 = vmax.xlane.f32.xlu0 %v1548
    %v1550 = vpop.xlane.xlu0 %1549
    %v1551 = vsel %vm1397, %v1384, -inf
    %1552 = vmax.xlane.f32.xlu0 %v1551
    %v1553 = vpop.xlane.xlu0 %1552
    %v1554 = vsel %vm1397, %v1385, -inf
    %1555 = vmax.xlane.f32.xlu0 %v1554
    %v1556 = vpop.xlane.xlu0 %1555
    %v1557 = vsel %vm1397, %v1386, -inf
    %1558 = vmax.xlane.f32.xlu0 %v1557
    %v1559 = vpop.xlane.xlu0 %1558
    %v1560 = vsel %vm1397, %v1387, -inf
    %1561 = vmax.xlane.f32.xlu0 %v1560
    %v1562 = vpop.xlane.xlu0 %1561
    %v1563 = vsel %vm1397, %v1388, -inf
    %1564 = vmax.xlane.f32.xlu0 %v1563
    %v1565 = vpop.xlane.xlu0 %1564
    %v1566 = vsel %vm1397, %v1389, -inf
    %1567 = vmax.xlane.f32.xlu0 %v1566
    %v1568 = vpop.xlane.xlu0 %1567
    %v1569 = vsel %vm1397, %v1390, -inf
    %1570 = vmax.xlane.f32.xlu0 %v1569
    %v1571 = vpop.xlane.xlu0 %1570
    %v1572 = vsel %vm1397, %v1391, -inf
    %1573 = vmax.xlane.f32.xlu0 %v1572
    %v1574 = vpop.xlane.xlu0 %1573
    %v1575 = vsel %vm1397, %v1392, -inf
    %1576 = vmax.xlane.f32.xlu0 %v1575
    %v1577 = vpop.xlane.xlu0 %1576
    %v1578 = vsel %vm1397, %v1393, -inf
    %1579 = vmax.xlane.f32.xlu0 %v1578
    %v1580 = vpop.xlane.xlu0 %1579
    %v1581 = vsel %vm1397, %v1394, -inf
    %1582 = vmax.xlane.f32.xlu0 %v1581
    %v1583 = vpop.xlane.xlu0 %1582
    %v1584 = vsel %vm1397, %v1395, -inf
    %1585 = vmax.xlane.f32.xlu0 %v1584
    %v1586 = vpop.xlane.xlu0 %1585
    %v1587 = vsel %vm1397, %v1396, -inf
    %1588 = vmax.xlane.f32.xlu0 %v1587
    %v1589 = vpop.xlane.xlu0 %1588
    %v1590 = vsub.f32 %v1333, %v1400
    %v1591 = vsub.f32 %v1334, %v1403
    %v1592 = vsub.f32 %v1335, %v1406
    %v1593 = vsub.f32 %v1336, %v1409
    %v1594 = vsub.f32 %v1337, %v1412
    %v1595 = vsub.f32 %v1338, %v1415
    %v1596 = vsub.f32 %v1339, %v1418
    %v1597 = vsub.f32 %v1340, %v1421
    %v1598 = vsub.f32 %v1341, %v1424
    %v1599 = vsub.f32 %v1342, %v1427
    %v1600 = vsub.f32 %v1343, %v1430
    %v1601 = vsub.f32 %v1344, %v1433
    %v1602 = vsub.f32 %v1345, %v1436
    %v1603 = vsub.f32 %v1346, %v1439
    %v1604 = vsub.f32 %v1347, %v1442
    %v1605 = vsub.f32 %v1348, %v1445
    %v1606 = vsub.f32 %v1349, %v1448
    %v1607 = vsub.f32 %v1350, %v1451
    %v1608 = vsub.f32 %v1351, %v1454
    %v1609 = vsub.f32 %v1352, %v1457
    %v1610 = vsub.f32 %v1353, %v1460
    %v1611 = vsub.f32 %v1354, %v1463
    %v1612 = vsub.f32 %v1355, %v1466
    %v1613 = vsub.f32 %v1356, %v1469
    %v1614 = vsub.f32 %v1357, %v1472
    %v1615 = vsub.f32 %v1358, %v1475
    %v1616 = vsub.f32 %v1359, %v1478
    %v1617 = vsub.f32 %v1360, %v1481
    %v1618 = vsub.f32 %v1361, %v1484
    %v1619 = vsub.f32 %v1362, %v1487
    %v1620 = vsub.f32 %v1363, %v1490
    %v1621 = vsub.f32 %v1364, %v1493
    %v1622 = vsub.f32 %v1365, %v1496
    %v1623 = vsub.f32 %v1366, %v1499
    %v1624 = vsub.f32 %v1367, %v1502
    %v1625 = vsub.f32 %v1368, %v1505
    %v1626 = vsub.f32 %v1369, %v1508
    %v1627 = vsub.f32 %v1370, %v1511
    %v1628 = vsub.f32 %v1371, %v1514
    %v1629 = vsub.f32 %v1372, %v1517
    %v1630 = vsub.f32 %v1373, %v1520
    %v1631 = vsub.f32 %v1374, %v1523
    %v1632 = vsub.f32 %v1375, %v1526
    %v1633 = vsub.f32 %v1376, %v1529
    %v1634 = vsub.f32 %v1377, %v1532
    %v1635 = vsub.f32 %v1378, %v1535
    %v1636 = vsub.f32 %v1379, %v1538
    %v1637 = vsub.f32 %v1380, %v1541
    %v1638 = vsub.f32 %v1381, %v1544
    %v1639 = vsub.f32 %v1382, %v1547
    %v1640 = vsub.f32 %v1383, %v1550
    %v1641 = vsub.f32 %v1384, %v1553
    %v1642 = vsub.f32 %v1385, %v1556
    %v1643 = vsub.f32 %v1386, %v1559
    %v1644 = vsub.f32 %v1387, %v1562
    %v1645 = vsub.f32 %v1388, %v1565
    %v1646 = vsub.f32 %v1389, %v1568
    %v1647 = vsub.f32 %v1390, %v1571
    %v1648 = vsub.f32 %v1391, %v1574
    %v1649 = vsub.f32 %v1392, %v1577
    %v1650 = vsub.f32 %v1393, %v1580
    %v1651 = vsub.f32 %v1394, %v1583
    %v1652 = vsub.f32 %v1395, %v1586
    %v1653 = vsub.f32 %v1396, %v1589
    %v1654 = vmul.f32 %v1590, 1.442695
    %v1655 = vpow.pop %v1654
    %v1656 = vmul.f32 %v1591, 1.442695
    %v1657 = vpow.pop %v1656
    %v1658 = vmul.f32 %v1592, 1.442695
    %v1659 = vpow.pop %v1658
    %v1660 = vmul.f32 %v1593, 1.442695
    %v1661 = vpow.pop %v1660
    %v1662 = vmul.f32 %v1594, 1.442695
    %v1663 = vpow.pop %v1662
    %v1664 = vmul.f32 %v1595, 1.442695
    %v1665 = vpow.pop %v1664
    %v1666 = vmul.f32 %v1596, 1.442695
    %v1667 = vpow.pop %v1666
    %v1668 = vmul.f32 %v1597, 1.442695
    %v1669 = vpow.pop %v1668
    %v1670 = vmul.f32 %v1598, 1.442695
    %v1671 = vpow.pop %v1670
    %v1672 = vmul.f32 %v1599, 1.442695
    %v1673 = vpow.pop %v1672
    %v1674 = vmul.f32 %v1600, 1.442695
    %v1675 = vpow.pop %v1674
    %v1676 = vmul.f32 %v1601, 1.442695
    %v1677 = vpow.pop %v1676
    %v1678 = vmul.f32 %v1602, 1.442695
    %v1679 = vpow.pop %v1678
    %v1680 = vmul.f32 %v1603, 1.442695
    %v1681 = vpow.pop %v1680
    %v1682 = vmul.f32 %v1604, 1.442695
    %v1683 = vpow.pop %v1682
    %v1684 = vmul.f32 %v1605, 1.442695
    %v1685 = vpow.pop %v1684
    %v1686 = vmul.f32 %v1606, 1.442695
    %v1687 = vpow.pop %v1686
    %v1688 = vmul.f32 %v1607, 1.442695
    %v1689 = vpow.pop %v1688
    %v1690 = vmul.f32 %v1608, 1.442695
    %v1691 = vpow.pop %v1690
    %v1692 = vmul.f32 %v1609, 1.442695
    %v1693 = vpow.pop %v1692
    %v1694 = vmul.f32 %v1610, 1.442695
    %v1695 = vpow.pop %v1694
    %v1696 = vmul.f32 %v1611, 1.442695
    %v1697 = vpow.pop %v1696
    %v1698 = vmul.f32 %v1612, 1.442695
    %v1699 = vpow.pop %v1698
    %v1700 = vmul.f32 %v1613, 1.442695
    %v1701 = vpow.pop %v1700
    %v1702 = vmul.f32 %v1614, 1.442695
    %v1703 = vpow.pop %v1702
    %v1704 = vmul.f32 %v1615, 1.442695
    %v1705 = vpow.pop %v1704
    %v1706 = vmul.f32 %v1616, 1.442695
    %v1707 = vpow.pop %v1706
    %v1708 = vmul.f32 %v1617, 1.442695
    %v1709 = vpow.pop %v1708
    %v1710 = vmul.f32 %v1618, 1.442695
    %v1711 = vpow.pop %v1710
    %v1712 = vmul.f32 %v1619, 1.442695
    %v1713 = vpow.pop %v1712
    %v1714 = vmul.f32 %v1620, 1.442695
    %v1715 = vpow.pop %v1714
    %v1716 = vmul.f32 %v1621, 1.442695
    %v1717 = vpow.pop %v1716
    %v1718 = vmul.f32 %v1622, 1.442695
    %v1719 = vpow.pop %v1718
    %v1720 = vmul.f32 %v1623, 1.442695
    %v1721 = vpow.pop %v1720
    %v1722 = vmul.f32 %v1624, 1.442695
    %v1723 = vpow.pop %v1722
    %v1724 = vmul.f32 %v1625, 1.442695
    %v1725 = vpow.pop %v1724
    %v1726 = vmul.f32 %v1626, 1.442695
    %v1727 = vpow.pop %v1726
    %v1728 = vmul.f32 %v1627, 1.442695
    %v1729 = vpow.pop %v1728
    %v1730 = vmul.f32 %v1628, 1.442695
    %v1731 = vpow.pop %v1730
    %v1732 = vmul.f32 %v1629, 1.442695
    %v1733 = vpow.pop %v1732
    %v1734 = vmul.f32 %v1630, 1.442695
    %v1735 = vpow.pop %v1734
    %v1736 = vmul.f32 %v1631, 1.442695
    %v1737 = vpow.pop %v1736
    %v1738 = vmul.f32 %v1632, 1.442695
    %v1739 = vpow.pop %v1738
    %v1740 = vmul.f32 %v1633, 1.442695
    %v1741 = vpow.pop %v1740
    %v1742 = vmul.f32 %v1634, 1.442695
    %v1743 = vpow.pop %v1742
    %v1744 = vmul.f32 %v1635, 1.442695
    %v1745 = vpow.pop %v1744
    %v1746 = vmul.f32 %v1636, 1.442695
    %v1747 = vpow.pop %v1746
    %v1748 = vmul.f32 %v1637, 1.442695
    %v1749 = vpow.pop %v1748
    %v1750 = vmul.f32 %v1638, 1.442695
    %v1751 = vpow.pop %v1750
    %v1752 = vmul.f32 %v1639, 1.442695
    %v1753 = vpow.pop %v1752
    %v1754 = vmul.f32 %v1640, 1.442695
    %v1755 = vpow.pop %v1754
    %v1756 = vmul.f32 %v1641, 1.442695
    %v1757 = vpow.pop %v1756
    %v1758 = vmul.f32 %v1642, 1.442695
    %v1759 = vpow.pop %v1758
    %v1760 = vmul.f32 %v1643, 1.442695
    %v1761 = vpow.pop %v1760
    %v1762 = vmul.f32 %v1644, 1.442695
    %v1763 = vpow.pop %v1762
    %v1764 = vmul.f32 %v1645, 1.442695
    %v1765 = vpow.pop %v1764
    %v1766 = vmul.f32 %v1646, 1.442695
    %v1767 = vpow.pop %v1766
    %v1768 = vmul.f32 %v1647, 1.442695
    %v1769 = vpow.pop %v1768
    %v1770 = vmul.f32 %v1648, 1.442695
    %v1771 = vpow.pop %v1770
    %v1772 = vmul.f32 %v1649, 1.442695
    %v1773 = vpow.pop %v1772
    %v1774 = vmul.f32 %v1650, 1.442695
    %v1775 = vpow.pop %v1774
    %v1776 = vmul.f32 %v1651, 1.442695
    %v1777 = vpow.pop %v1776
    %v1778 = vmul.f32 %v1652, 1.442695
    %v1779 = vpow.pop %v1778
    %v1780 = vmul.f32 %v1653, 1.442695
    %v1781 = vpow.pop %v1780
    %v1782 = vsel %vm1397, %v1655, 0.0
    %1783 = vadd.xlane.f32.xlu0 %v1782
    %v1784 = vpop.xlane.xlu0 %1783
    %v1785 = vsel %vm1397, %v1657, 0.0
    %1786 = vadd.xlane.f32.xlu0 %v1785
    %v1787 = vpop.xlane.xlu0 %1786
    %v1788 = vsel %vm1397, %v1659, 0.0
    %1789 = vadd.xlane.f32.xlu0 %v1788
    %v1790 = vpop.xlane.xlu0 %1789
    %v1791 = vsel %vm1397, %v1661, 0.0
    %1792 = vadd.xlane.f32.xlu0 %v1791
    %v1793 = vpop.xlane.xlu0 %1792
    %v1794 = vsel %vm1397, %v1663, 0.0
    %1795 = vadd.xlane.f32.xlu0 %v1794
    %v1796 = vpop.xlane.xlu0 %1795
    %v1797 = vsel %vm1397, %v1665, 0.0
    %1798 = vadd.xlane.f32.xlu0 %v1797
    %v1799 = vpop.xlane.xlu0 %1798
    %v1800 = vsel %vm1397, %v1667, 0.0
    %1801 = vadd.xlane.f32.xlu0 %v1800
    %v1802 = vpop.xlane.xlu0 %1801
    %v1803 = vsel %vm1397, %v1669, 0.0
    %1804 = vadd.xlane.f32.xlu0 %v1803
    %v1805 = vpop.xlane.xlu0 %1804
    %v1806 = vsel %vm1397, %v1671, 0.0
    %1807 = vadd.xlane.f32.xlu0 %v1806
    %v1808 = vpop.xlane.xlu0 %1807
    %v1809 = vsel %vm1397, %v1673, 0.0
    %1810 = vadd.xlane.f32.xlu0 %v1809
    %v1811 = vpop.xlane.xlu0 %1810
    %v1812 = vsel %vm1397, %v1675, 0.0
    %1813 = vadd.xlane.f32.xlu0 %v1812
    %v1814 = vpop.xlane.xlu0 %1813
    %v1815 = vsel %vm1397, %v1677, 0.0
    %1816 = vadd.xlane.f32.xlu0 %v1815
    %v1817 = vpop.xlane.xlu0 %1816
    %v1818 = vsel %vm1397, %v1679, 0.0
    %1819 = vadd.xlane.f32.xlu0 %v1818
    %v1820 = vpop.xlane.xlu0 %1819
    %v1821 = vsel %vm1397, %v1681, 0.0
    %1822 = vadd.xlane.f32.xlu0 %v1821
    %v1823 = vpop.xlane.xlu0 %1822
    %v1824 = vsel %vm1397, %v1683, 0.0
    %1825 = vadd.xlane.f32.xlu0 %v1824
    %v1826 = vpop.xlane.xlu0 %1825
    %v1827 = vsel %vm1397, %v1685, 0.0
    %1828 = vadd.xlane.f32.xlu0 %v1827
    %v1829 = vpop.xlane.xlu0 %1828
    %v1830 = vsel %vm1397, %v1687, 0.0
    %1831 = vadd.xlane.f32.xlu0 %v1830
    %v1832 = vpop.xlane.xlu0 %1831
    %v1833 = vsel %vm1397, %v1689, 0.0
    %1834 = vadd.xlane.f32.xlu0 %v1833
    %v1835 = vpop.xlane.xlu0 %1834
    %v1836 = vsel %vm1397, %v1691, 0.0
    %1837 = vadd.xlane.f32.xlu0 %v1836
    %v1838 = vpop.xlane.xlu0 %1837
    %v1839 = vsel %vm1397, %v1693, 0.0
    %1840 = vadd.xlane.f32.xlu0 %v1839
    %v1841 = vpop.xlane.xlu0 %1840
    %v1842 = vsel %vm1397, %v1695, 0.0
    %1843 = vadd.xlane.f32.xlu0 %v1842
    %v1844 = vpop.xlane.xlu0 %1843
    %v1845 = vsel %vm1397, %v1697, 0.0
    %1846 = vadd.xlane.f32.xlu0 %v1845
    %v1847 = vpop.xlane.xlu0 %1846
    %v1848 = vsel %vm1397, %v1699, 0.0
    %1849 = vadd.xlane.f32.xlu0 %v1848
    %v1850 = vpop.xlane.xlu0 %1849
    %v1851 = vsel %vm1397, %v1701, 0.0
    %1852 = vadd.xlane.f32.xlu0 %v1851
    %v1853 = vpop.xlane.xlu0 %1852
    %v1854 = vsel %vm1397, %v1703, 0.0
    %1855 = vadd.xlane.f32.xlu0 %v1854
    %v1856 = vpop.xlane.xlu0 %1855
    %v1857 = vsel %vm1397, %v1705, 0.0
    %1858 = vadd.xlane.f32.xlu0 %v1857
    %v1859 = vpop.xlane.xlu0 %1858
    %v1860 = vsel %vm1397, %v1707, 0.0
    %1861 = vadd.xlane.f32.xlu0 %v1860
    %v1862 = vpop.xlane.xlu0 %1861
    %v1863 = vsel %vm1397, %v1709, 0.0
    %1864 = vadd.xlane.f32.xlu0 %v1863
    %v1865 = vpop.xlane.xlu0 %1864
    %v1866 = vsel %vm1397, %v1711, 0.0
    %1867 = vadd.xlane.f32.xlu0 %v1866
    %v1868 = vpop.xlane.xlu0 %1867
    %v1869 = vsel %vm1397, %v1713, 0.0
    %1870 = vadd.xlane.f32.xlu0 %v1869
    %v1871 = vpop.xlane.xlu0 %1870
    %v1872 = vsel %vm1397, %v1715, 0.0
    %1873 = vadd.xlane.f32.xlu0 %v1872
    %v1874 = vpop.xlane.xlu0 %1873
    %v1875 = vsel %vm1397, %v1717, 0.0
    %1876 = vadd.xlane.f32.xlu0 %v1875
    %v1877 = vpop.xlane.xlu0 %1876
    %v1878 = vsel %vm1397, %v1719, 0.0
    %1879 = vadd.xlane.f32.xlu0 %v1878
    %v1880 = vpop.xlane.xlu0 %1879
    %v1881 = vsel %vm1397, %v1721, 0.0
    %1882 = vadd.xlane.f32.xlu0 %v1881
    %v1883 = vpop.xlane.xlu0 %1882
    %v1884 = vsel %vm1397, %v1723, 0.0
    %1885 = vadd.xlane.f32.xlu0 %v1884
    %v1886 = vpop.xlane.xlu0 %1885
    %v1887 = vsel %vm1397, %v1725, 0.0
    %1888 = vadd.xlane.f32.xlu0 %v1887
    %v1889 = vpop.xlane.xlu0 %1888
    %v1890 = vsel %vm1397, %v1727, 0.0
    %1891 = vadd.xlane.f32.xlu0 %v1890
    %v1892 = vpop.xlane.xlu0 %1891
    %v1893 = vsel %vm1397, %v1729, 0.0
    %1894 = vadd.xlane.f32.xlu0 %v1893
    %v1895 = vpop.xlane.xlu0 %1894
    %v1896 = vsel %vm1397, %v1731, 0.0
    %1897 = vadd.xlane.f32.xlu0 %v1896
    %v1898 = vpop.xlane.xlu0 %1897
    %v1899 = vsel %vm1397, %v1733, 0.0
    %1900 = vadd.xlane.f32.xlu0 %v1899
    %v1901 = vpop.xlane.xlu0 %1900
    %v1902 = vsel %vm1397, %v1735, 0.0
    %1903 = vadd.xlane.f32.xlu0 %v1902
    %v1904 = vpop.xlane.xlu0 %1903
    %v1905 = vsel %vm1397, %v1737, 0.0
    %1906 = vadd.xlane.f32.xlu0 %v1905
    %v1907 = vpop.xlane.xlu0 %1906
    %v1908 = vsel %vm1397, %v1739, 0.0
    %1909 = vadd.xlane.f32.xlu0 %v1908
    %v1910 = vpop.xlane.xlu0 %1909
    %v1911 = vsel %vm1397, %v1741, 0.0
    %1912 = vadd.xlane.f32.xlu0 %v1911
    %v1913 = vpop.xlane.xlu0 %1912
    %v1914 = vsel %vm1397, %v1743, 0.0
    %1915 = vadd.xlane.f32.xlu0 %v1914
    %v1916 = vpop.xlane.xlu0 %1915
    %v1917 = vsel %vm1397, %v1745, 0.0
    %1918 = vadd.xlane.f32.xlu0 %v1917
    %v1919 = vpop.xlane.xlu0 %1918
    %v1920 = vsel %vm1397, %v1747, 0.0
    %1921 = vadd.xlane.f32.xlu0 %v1920
    %v1922 = vpop.xlane.xlu0 %1921
    %v1923 = vsel %vm1397, %v1749, 0.0
    %1924 = vadd.xlane.f32.xlu0 %v1923
    %v1925 = vpop.xlane.xlu0 %1924
    %v1926 = vsel %vm1397, %v1751, 0.0
    %1927 = vadd.xlane.f32.xlu0 %v1926
    %v1928 = vpop.xlane.xlu0 %1927
    %v1929 = vsel %vm1397, %v1753, 0.0
    %1930 = vadd.xlane.f32.xlu0 %v1929
    %v1931 = vpop.xlane.xlu0 %1930
    %v1932 = vsel %vm1397, %v1755, 0.0
    %1933 = vadd.xlane.f32.xlu0 %v1932
    %v1934 = vpop.xlane.xlu0 %1933
    %v1935 = vsel %vm1397, %v1757, 0.0
    %1936 = vadd.xlane.f32.xlu0 %v1935
    %v1937 = vpop.xlane.xlu0 %1936
    %v1938 = vsel %vm1397, %v1759, 0.0
    %1939 = vadd.xlane.f32.xlu0 %v1938
    %v1940 = vpop.xlane.xlu0 %1939
    %v1941 = vsel %vm1397, %v1761, 0.0
    %1942 = vadd.xlane.f32.xlu0 %v1941
    %v1943 = vpop.xlane.xlu0 %1942
    %v1944 = vsel %vm1397, %v1763, 0.0
    %1945 = vadd.xlane.f32.xlu0 %v1944
    %v1946 = vpop.xlane.xlu0 %1945
    %v1947 = vsel %vm1397, %v1765, 0.0
    %1948 = vadd.xlane.f32.xlu0 %v1947
    %v1949 = vpop.xlane.xlu0 %1948
    %v1950 = vsel %vm1397, %v1767, 0.0
    %1951 = vadd.xlane.f32.xlu0 %v1950
    %v1952 = vpop.xlane.xlu0 %1951
    %v1953 = vsel %vm1397, %v1769, 0.0
    %1954 = vadd.xlane.f32.xlu0 %v1953
    %v1955 = vpop.xlane.xlu0 %1954
    %v1956 = vsel %vm1397, %v1771, 0.0
    %1957 = vadd.xlane.f32.xlu0 %v1956
    %v1958 = vpop.xlane.xlu0 %1957
    %v1959 = vsel %vm1397, %v1773, 0.0
    %1960 = vadd.xlane.f32.xlu0 %v1959
    %v1961 = vpop.xlane.xlu0 %1960
    %v1962 = vsel %vm1397, %v1775, 0.0
    %1963 = vadd.xlane.f32.xlu0 %v1962
    %v1964 = vpop.xlane.xlu0 %1963
    %v1965 = vsel %vm1397, %v1777, 0.0
    %1966 = vadd.xlane.f32.xlu0 %v1965
    %v1967 = vpop.xlane.xlu0 %1966
    %v1968 = vsel %vm1397, %v1779, 0.0
    %1969 = vadd.xlane.f32.xlu0 %v1968
    %v1970 = vpop.xlane.xlu0 %1969
    %v1971 = vsel %vm1397, %v1781, 0.0
    %1972 = vadd.xlane.f32.xlu0 %v1971
    %v1973 = vpop.xlane.xlu0 %1972
    %v1974 = vrcp.pop %v1784
    %v1975 = vrcp.pop %v1787
    %v1976 = vrcp.pop %v1790
    %v1977 = vrcp.pop %v1793
    %v1978 = vrcp.pop %v1796
    %v1979 = vrcp.pop %v1799
    %v1980 = vrcp.pop %v1802
    %v1981 = vrcp.pop %v1805
    %v1982 = vrcp.pop %v1808
    %v1983 = vrcp.pop %v1811
    %v1984 = vrcp.pop %v1814
    %v1985 = vrcp.pop %v1817
    %v1986 = vrcp.pop %v1820
    %v1987 = vrcp.pop %v1823
    %v1988 = vrcp.pop %v1826
    %v1989 = vrcp.pop %v1829
    %v1990 = vrcp.pop %v1832
    %v1991 = vrcp.pop %v1835
    %v1992 = vrcp.pop %v1838
    %v1993 = vrcp.pop %v1841
    %v1994 = vrcp.pop %v1844
    %v1995 = vrcp.pop %v1847
    %v1996 = vrcp.pop %v1850
    %v1997 = vrcp.pop %v1853
    %v1998 = vrcp.pop %v1856
    %v1999 = vrcp.pop %v1859
    %v2000 = vrcp.pop %v1862
    %v2001 = vrcp.pop %v1865
    %v2002 = vrcp.pop %v1868
    %v2003 = vrcp.pop %v1871
    %v2004 = vrcp.pop %v1874
    %v2005 = vrcp.pop %v1877
    %v2006 = vrcp.pop %v1880
    %v2007 = vrcp.pop %v1883
    %v2008 = vrcp.pop %v1886
    %v2009 = vrcp.pop %v1889
    %v2010 = vrcp.pop %v1892
    %v2011 = vrcp.pop %v1895
    %v2012 = vrcp.pop %v1898
    %v2013 = vrcp.pop %v1901
    %v2014 = vrcp.pop %v1904
    %v2015 = vrcp.pop %v1907
    %v2016 = vrcp.pop %v1910
    %v2017 = vrcp.pop %v1913
    %v2018 = vrcp.pop %v1916
    %v2019 = vrcp.pop %v1919
    %v2020 = vrcp.pop %v1922
    %v2021 = vrcp.pop %v1925
    %v2022 = vrcp.pop %v1928
    %v2023 = vrcp.pop %v1931
    %v2024 = vrcp.pop %v1934
    %v2025 = vrcp.pop %v1937
    %v2026 = vrcp.pop %v1940
    %v2027 = vrcp.pop %v1943
    %v2028 = vrcp.pop %v1946
    %v2029 = vrcp.pop %v1949
    %v2030 = vrcp.pop %v1952
    %v2031 = vrcp.pop %v1955
    %v2032 = vrcp.pop %v1958
    %v2033 = vrcp.pop %v1961
    %v2034 = vrcp.pop %v1964
    %v2035 = vrcp.pop %v1967
    %v2036 = vrcp.pop %v1970
    %v2037 = vrcp.pop %v1973
    %v2038 = vmul.f32 %v1655, %v1974
    %v2039 = vmul.f32 %v1657, %v1975
    %v2040 = vmul.f32 %v1659, %v1976
    %v2041 = vmul.f32 %v1661, %v1977
    %v2042 = vmul.f32 %v1663, %v1978
    %v2043 = vmul.f32 %v1665, %v1979
    %v2044 = vmul.f32 %v1667, %v1980
    %v2045 = vmul.f32 %v1669, %v1981
    %v2046 = vmul.f32 %v1671, %v1982
    %v2047 = vmul.f32 %v1673, %v1983
    %v2048 = vmul.f32 %v1675, %v1984
    %v2049 = vmul.f32 %v1677, %v1985
    %v2050 = vmul.f32 %v1679, %v1986
    %v2051 = vmul.f32 %v1681, %v1987
    %v2052 = vmul.f32 %v1683, %v1988
    %v2053 = vmul.f32 %v1685, %v1989
    %v2054 = vmul.f32 %v1687, %v1990
    %v2055 = vmul.f32 %v1689, %v1991
    %v2056 = vmul.f32 %v1691, %v1992
    %v2057 = vmul.f32 %v1693, %v1993
    %v2058 = vmul.f32 %v1695, %v1994
    %v2059 = vmul.f32 %v1697, %v1995
    %v2060 = vmul.f32 %v1699, %v1996
    %v2061 = vmul.f32 %v1701, %v1997
    %v2062 = vmul.f32 %v1703, %v1998
    %v2063 = vmul.f32 %v1705, %v1999
    %v2064 = vmul.f32 %v1707, %v2000
    %v2065 = vmul.f32 %v1709, %v2001
    %v2066 = vmul.f32 %v1711, %v2002
    %v2067 = vmul.f32 %v1713, %v2003
    %v2068 = vmul.f32 %v1715, %v2004
    %v2069 = vmul.f32 %v1717, %v2005
    %v2070 = vmul.f32 %v1719, %v2006
    %v2071 = vmul.f32 %v1721, %v2007
    %v2072 = vmul.f32 %v1723, %v2008
    %v2073 = vmul.f32 %v1725, %v2009
    %v2074 = vmul.f32 %v1727, %v2010
    %v2075 = vmul.f32 %v1729, %v2011
    %v2076 = vmul.f32 %v1731, %v2012
    %v2077 = vmul.f32 %v1733, %v2013
    %v2078 = vmul.f32 %v1735, %v2014
    %v2079 = vmul.f32 %v1737, %v2015
    %v2080 = vmul.f32 %v1739, %v2016
    %v2081 = vmul.f32 %v1741, %v2017
    %v2082 = vmul.f32 %v1743, %v2018
    %v2083 = vmul.f32 %v1745, %v2019
    %v2084 = vmul.f32 %v1747, %v2020
    %v2085 = vmul.f32 %v1749, %v2021
    %v2086 = vmul.f32 %v1751, %v2022
    %v2087 = vmul.f32 %v1753, %v2023
    %v2088 = vmul.f32 %v1755, %v2024
    %v2089 = vmul.f32 %v1757, %v2025
    %v2090 = vmul.f32 %v1759, %v2026
    %v2091 = vmul.f32 %v1761, %v2027
    %v2092 = vmul.f32 %v1763, %v2028
    %v2093 = vmul.f32 %v1765, %v2029
    %v2094 = vmul.f32 %v1767, %v2030
    %v2095 = vmul.f32 %v1769, %v2031
    %v2096 = vmul.f32 %v1771, %v2032
    %v2097 = vmul.f32 %v1773, %v2033
    %v2098 = vmul.f32 %v1775, %v2034
    %v2099 = vmul.f32 %v1777, %v2035
    %v2100 = vmul.f32 %v1779, %v2036
    %v2101 = vmul.f32 %v1781, %v2037
    %v2102 = vpack.c.bf16 %v142, %v142
    %v2103 = vpack.c.bf16 %v144, %v144
    %v2104 = vpack.c.bf16 %v147, %v147
    %v2105 = vpack.c.bf16 %v149, %v149
    %v2106 = vpack.c.bf16 %v152, %v152
    %v2107 = vpack.c.bf16 %v154, %v154
    %v2108 = vpack.c.bf16 %v157, %v157
    %v2109 = vpack.c.bf16 %v159, %v159
    %v2110 = vpack.c.bf16 %v162, %v162
    %v2111 = vpack.c.bf16 %v164, %v164
    %v2112 = vpack.c.bf16 %v167, %v167
    %v2113 = vpack.c.bf16 %v169, %v169
    %v2114 = vpack.c.bf16 %v172, %v172
    %v2115 = vpack.c.bf16 %v174, %v174
    %v2116 = vpack.c.bf16 %v177, %v177
    %v2117 = vpack.c.bf16 %v179, %v179
    %v2118 = vld [vmem:[%s3] sm:$0xff]
    %v2119 = vld [vmem:[%s3 + $0x8] sm:$0xff]
    %v2120 = vld [vmem:[%s3 + $0x10] sm:$0xff]
    %v2121 = vld [vmem:[%s3 + $0x18] sm:$0xff]
    %v2122 = vld [vmem:[%s3 + $0x20] sm:$0xff]
    %v2123 = vld [vmem:[%s3 + $0x28] sm:$0xff]
    %v2124 = vld [vmem:[%s3 + $0x30] sm:$0xff]
    %v2125 = vld [vmem:[%s3 + $0x38] sm:$0xff]
    %v2126 = vpack.c.bf16 %v2039, %v2038
    %v2127 = vpack.c.bf16 %v2041, %v2040
    %v2128 = vpack.c.bf16 %v2043, %v2042
    %v2129 = vpack.c.bf16 %v2045, %v2044
    %v2132 = vunpack.c.l.b16 %v2102
    %v2133 = vunpack.c.l.b16 %v2103
    %v2134 = vpack.c.b16 %v2133, %v2132
    %v2137 = vsel %vm1397, %v2126, 0
    %v2140 = vsel %vm1397, %v2127, 0
    %v2143 = vsel %vm1397, %v2128, 0
    %v2146 = vsel %vm1397, %v2129, 0
    %2148 = vmatpush.bf16.msra.mxu0 0
    %2149 = vmatpush.bf16.msra.mxu0 0
    %2150 = vmatpush.bf16.msra.mxu0 0
    %2151 = vmatpush.bf16.msra.mxu0 0
    %2152 = vmatpush.bf16.msra.mxu0 0
    %2153 = vmatpush.bf16.msra.mxu0 0
    %2154 = vmatpush.bf16.msra.mxu0 0
    %2155 = vmatpush.bf16.msra.mxu0 %v2134
    %2156 = vmatmul.bf16.gmra.mxu0 %v2137
    %v2157 = vpop.f32.mrf.mxu0
    %v2158 = vadd.f32 0.0, %v2157
    %v2159 = vpop.f32.mrf.mxu0
    %v2160 = vadd.f32 0.0, %v2159
    %2161 = vmatmul.bf16.gmra.mxu0 %v2140
    %v2162 = vpop.f32.mrf.mxu0
    %v2163 = vadd.f32 0.0, %v2162
    %v2164 = vpop.f32.mrf.mxu0
    %v2165 = vadd.f32 0.0, %v2164
    %2166 = vmatmul.bf16.gmra.mxu0 %v2143
    %v2167 = vpop.f32.mrf.mxu0
    %v2168 = vadd.f32 0.0, %v2167
    %v2169 = vpop.f32.mrf.mxu0
    %v2170 = vadd.f32 0.0, %v2169
    %2171 = vmatmul.bf16.gmra.mxu0 %v2146
    %v2172 = vpop.f32.mrf.mxu0
    %v2173 = vadd.f32 0.0, %v2172
    %v2174 = vpop.f32.mrf.mxu0
    %v2175 = vadd.f32 0.0, %v2174
    %2176 = vdwg.mxu0
    %v2177 = vmul.f32 %v2158, %v2118
    %v2178 = vmul.f32 %v2160, %v2119
    %v2179 = vmul.f32 %v2163, %v2120
    %v2180 = vmul.f32 %v2165, %v2121
    %v2181 = vmul.f32 %v2168, %v2122
    %v2182 = vmul.f32 %v2170, %v2123
    %v2183 = vmul.f32 %v2173, %v2124
    %v2184 = vmul.f32 %v2175, %v2125
    %vm2185 = vcmask 523264
    %v2186 = vsel %vm2185, %v2177, 0.0
    %v2187 = vsel %vm2185, %v2179, 0.0
    %v2188 = vadd.f32 %v2186, %v2187
    %v2189 = vsel %vm2185, %v2181, 0.0
    %v2190 = vadd.f32 %v2188, %v2189
    %v2191 = vsel %vm2185, %v2183, 0.0
    %v2192 = vadd.f32 %v2190, %v2191
    %v2193 = vsel %vm2185, %v2178, 0.0
    %v2194 = vsel %vm2185, %v2180, 0.0
    %v2195 = vadd.f32 %v2193, %v2194
    %v2196 = vsel %vm2185, %v2182, 0.0
    %v2197 = vadd.f32 %v2195, %v2196
    %v2198 = vsel %vm2185, %v2184, 0.0
    %v2199 = vadd.f32 %v2197, %v2198
    %v2200 = vpack.c.bf16 %v2047, %v2046
    %v2201 = vpack.c.bf16 %v2049, %v2048
    %v2202 = vpack.c.bf16 %v2051, %v2050
    %v2203 = vpack.c.bf16 %v2053, %v2052
    %v2206 = vunpack.c.l.b16 %v2104
    %v2207 = vunpack.c.l.b16 %v2105
    %v2208 = vpack.c.b16 %v2207, %v2206
    %v2211 = vsel %vm1397, %v2200, 0
    %v2214 = vsel %vm1397, %v2201, 0
    %v2217 = vsel %vm1397, %v2202, 0
    %v2220 = vsel %vm1397, %v2203, 0
    %2222 = vmatpush.bf16.msra.mxu0 0
    %2223 = vmatpush.bf16.msra.mxu0 0
    %2224 = vmatpush.bf16.msra.mxu0 0
    %2225 = vmatpush.bf16.msra.mxu0 0
    %2226 = vmatpush.bf16.msra.mxu0 0
    %2227 = vmatpush.bf16.msra.mxu0 0
    %2228 = vmatpush.bf16.msra.mxu0 0
    %2229 = vmatpush.bf16.msra.mxu0 %v2208
    %2230 = vmatmul.bf16.gmra.mxu0 %v2211
    %v2231 = vpop.f32.mrf.mxu0
    %v2232 = vadd.f32 0.0, %v2231
    %v2233 = vpop.f32.mrf.mxu0
    %v2234 = vadd.f32 0.0, %v2233
    %2235 = vmatmul.bf16.gmra.mxu0 %v2214
    %v2236 = vpop.f32.mrf.mxu0
    %v2237 = vadd.f32 0.0, %v2236
    %v2238 = vpop.f32.mrf.mxu0
    %v2239 = vadd.f32 0.0, %v2238
    %2240 = vmatmul.bf16.gmra.mxu0 %v2217
    %v2241 = vpop.f32.mrf.mxu0
    %v2242 = vadd.f32 0.0, %v2241
    %v2243 = vpop.f32.mrf.mxu0
    %v2244 = vadd.f32 0.0, %v2243
    %2245 = vmatmul.bf16.gmra.mxu0 %v2220
    %v2246 = vpop.f32.mrf.mxu0
    %v2247 = vadd.f32 0.0, %v2246
    %v2248 = vpop.f32.mrf.mxu0
    %v2249 = vadd.f32 0.0, %v2248
    %2250 = vdwg.mxu0
    %v2251 = vmul.f32 %v2232, %v2118
    %v2252 = vmul.f32 %v2234, %v2119
    %v2253 = vmul.f32 %v2237, %v2120
    %v2254 = vmul.f32 %v2239, %v2121
    %v2255 = vmul.f32 %v2242, %v2122
    %v2256 = vmul.f32 %v2244, %v2123
    %v2257 = vmul.f32 %v2247, %v2124
    %v2258 = vmul.f32 %v2249, %v2125
    %v2259 = vsel %vm2185, %v2251, 0.0
    %v2260 = vsel %vm2185, %v2253, 0.0
    %v2261 = vadd.f32 %v2259, %v2260
    %v2262 = vsel %vm2185, %v2255, 0.0
    %v2263 = vadd.f32 %v2261, %v2262
    %v2264 = vsel %vm2185, %v2257, 0.0
    %v2265 = vadd.f32 %v2263, %v2264
    %v2266 = vsel %vm2185, %v2252, 0.0
    %v2267 = vsel %vm2185, %v2254, 0.0
    %v2268 = vadd.f32 %v2266, %v2267
    %v2269 = vsel %vm2185, %v2256, 0.0
    %v2270 = vadd.f32 %v2268, %v2269
    %v2271 = vsel %vm2185, %v2258, 0.0
    %v2272 = vadd.f32 %v2270, %v2271
    %v2273 = vpack.c.bf16 %v2055, %v2054
    %v2274 = vpack.c.bf16 %v2057, %v2056
    %v2275 = vpack.c.bf16 %v2059, %v2058
    %v2276 = vpack.c.bf16 %v2061, %v2060
    %v2279 = vunpack.c.l.b16 %v2106
    %v2280 = vunpack.c.l.b16 %v2107
    %v2281 = vpack.c.b16 %v2280, %v2279
    %v2284 = vsel %vm1397, %v2273, 0
    %v2287 = vsel %vm1397, %v2274, 0
    %v2290 = vsel %vm1397, %v2275, 0
    %v2293 = vsel %vm1397, %v2276, 0
    %2295 = vmatpush.bf16.msra.mxu0 0
    %2296 = vmatpush.bf16.msra.mxu0 0
    %2297 = vmatpush.bf16.msra.mxu0 0
    %2298 = vmatpush.bf16.msra.mxu0 0
    %2299 = vmatpush.bf16.msra.mxu0 0
    %2300 = vmatpush.bf16.msra.mxu0 0
    %2301 = vmatpush.bf16.msra.mxu0 0
    %2302 = vmatpush.bf16.msra.mxu0 %v2281
    %2303 = vmatmul.bf16.gmra.mxu0 %v2284
    %v2304 = vpop.f32.mrf.mxu0
    %v2305 = vadd.f32 0.0, %v2304
    %v2306 = vpop.f32.mrf.mxu0
    %v2307 = vadd.f32 0.0, %v2306
    %2308 = vmatmul.bf16.gmra.mxu0 %v2287
    %v2309 = vpop.f32.mrf.mxu0
    %v2310 = vadd.f32 0.0, %v2309
    %v2311 = vpop.f32.mrf.mxu0
    %v2312 = vadd.f32 0.0, %v2311
    %2313 = vmatmul.bf16.gmra.mxu0 %v2290
    %v2314 = vpop.f32.mrf.mxu0
    %v2315 = vadd.f32 0.0, %v2314
    %v2316 = vpop.f32.mrf.mxu0
    %v2317 = vadd.f32 0.0, %v2316
    %2318 = vmatmul.bf16.gmra.mxu0 %v2293
    %v2319 = vpop.f32.mrf.mxu0
    %v2320 = vadd.f32 0.0, %v2319
    %v2321 = vpop.f32.mrf.mxu0
    %v2322 = vadd.f32 0.0, %v2321
    %2323 = vdwg.mxu0
    %v2324 = vmul.f32 %v2305, %v2118
    %v2325 = vmul.f32 %v2307, %v2119
    %v2326 = vmul.f32 %v2310, %v2120
    %v2327 = vmul.f32 %v2312, %v2121
    %v2328 = vmul.f32 %v2315, %v2122
    %v2329 = vmul.f32 %v2317, %v2123
    %v2330 = vmul.f32 %v2320, %v2124
    %v2331 = vmul.f32 %v2322, %v2125
    %v2332 = vsel %vm2185, %v2324, 0.0
    %v2333 = vsel %vm2185, %v2326, 0.0
    %v2334 = vadd.f32 %v2332, %v2333
    %v2335 = vsel %vm2185, %v2328, 0.0
    %v2336 = vadd.f32 %v2334, %v2335
    %v2337 = vsel %vm2185, %v2330, 0.0
    %v2338 = vadd.f32 %v2336, %v2337
    %v2339 = vsel %vm2185, %v2325, 0.0
    %v2340 = vsel %vm2185, %v2327, 0.0
    %v2341 = vadd.f32 %v2339, %v2340
    %v2342 = vsel %vm2185, %v2329, 0.0
    %v2343 = vadd.f32 %v2341, %v2342
    %v2344 = vsel %vm2185, %v2331, 0.0
    %v2345 = vadd.f32 %v2343, %v2344
    %v2346 = vpack.c.bf16 %v2063, %v2062
    %v2347 = vpack.c.bf16 %v2065, %v2064
    %v2348 = vpack.c.bf16 %v2067, %v2066
    %v2349 = vpack.c.bf16 %v2069, %v2068
    %v2352 = vunpack.c.l.b16 %v2108
    %v2353 = vunpack.c.l.b16 %v2109
    %v2354 = vpack.c.b16 %v2353, %v2352
    %v2357 = vsel %vm1397, %v2346, 0
    %v2360 = vsel %vm1397, %v2347, 0
    %v2363 = vsel %vm1397, %v2348, 0
    %v2366 = vsel %vm1397, %v2349, 0
    %2368 = vmatpush.bf16.msra.mxu0 0
    %2369 = vmatpush.bf16.msra.mxu0 0
    %2370 = vmatpush.bf16.msra.mxu0 0
    %2371 = vmatpush.bf16.msra.mxu0 0
    %2372 = vmatpush.bf16.msra.mxu0 0
    %2373 = vmatpush.bf16.msra.mxu0 0
    %2374 = vmatpush.bf16.msra.mxu0 0
    %2375 = vmatpush.bf16.msra.mxu0 %v2354
    %2376 = vmatmul.bf16.gmra.mxu0 %v2357
    %v2377 = vpop.f32.mrf.mxu0
    %v2378 = vadd.f32 0.0, %v2377
    %v2379 = vpop.f32.mrf.mxu0
    %v2380 = vadd.f32 0.0, %v2379
    %2381 = vmatmul.bf16.gmra.mxu0 %v2360
    %v2382 = vpop.f32.mrf.mxu0
    %v2383 = vadd.f32 0.0, %v2382
    %v2384 = vpop.f32.mrf.mxu0
    %v2385 = vadd.f32 0.0, %v2384
    %2386 = vmatmul.bf16.gmra.mxu0 %v2363
    %v2387 = vpop.f32.mrf.mxu0
    %v2388 = vadd.f32 0.0, %v2387
    %v2389 = vpop.f32.mrf.mxu0
    %v2390 = vadd.f32 0.0, %v2389
    %2391 = vmatmul.bf16.gmra.mxu0 %v2366
    %v2392 = vpop.f32.mrf.mxu0
    %v2393 = vadd.f32 0.0, %v2392
    %v2394 = vpop.f32.mrf.mxu0
    %v2395 = vadd.f32 0.0, %v2394
    %2396 = vdwg.mxu0
    %v2397 = vmul.f32 %v2378, %v2118
    %v2398 = vmul.f32 %v2380, %v2119
    %v2399 = vmul.f32 %v2383, %v2120
    %v2400 = vmul.f32 %v2385, %v2121
    %v2401 = vmul.f32 %v2388, %v2122
    %v2402 = vmul.f32 %v2390, %v2123
    %v2403 = vmul.f32 %v2393, %v2124
    %v2404 = vmul.f32 %v2395, %v2125
    %v2405 = vsel %vm2185, %v2397, 0.0
    %v2406 = vsel %vm2185, %v2399, 0.0
    %v2407 = vadd.f32 %v2405, %v2406
    %v2408 = vsel %vm2185, %v2401, 0.0
    %v2409 = vadd.f32 %v2407, %v2408
    %v2410 = vsel %vm2185, %v2403, 0.0
    %v2411 = vadd.f32 %v2409, %v2410
    %v2412 = vsel %vm2185, %v2398, 0.0
    %v2413 = vsel %vm2185, %v2400, 0.0
    %v2414 = vadd.f32 %v2412, %v2413
    %v2415 = vsel %vm2185, %v2402, 0.0
    %v2416 = vadd.f32 %v2414, %v2415
    %v2417 = vsel %vm2185, %v2404, 0.0
    %v2418 = vadd.f32 %v2416, %v2417
    %v2419 = vpack.c.bf16 %v2071, %v2070
    %v2420 = vpack.c.bf16 %v2073, %v2072
    %v2421 = vpack.c.bf16 %v2075, %v2074
    %v2422 = vpack.c.bf16 %v2077, %v2076
    %v2425 = vunpack.c.l.b16 %v2110
    %v2426 = vunpack.c.l.b16 %v2111
    %v2427 = vpack.c.b16 %v2426, %v2425
    %v2430 = vsel %vm1397, %v2419, 0
    %v2433 = vsel %vm1397, %v2420, 0
    %v2436 = vsel %vm1397, %v2421, 0
    %v2439 = vsel %vm1397, %v2422, 0
    %2441 = vmatpush.bf16.msra.mxu0 0
    %2442 = vmatpush.bf16.msra.mxu0 0
    %2443 = vmatpush.bf16.msra.mxu0 0
    %2444 = vmatpush.bf16.msra.mxu0 0
    %2445 = vmatpush.bf16.msra.mxu0 0
    %2446 = vmatpush.bf16.msra.mxu0 0
    %2447 = vmatpush.bf16.msra.mxu0 0
    %2448 = vmatpush.bf16.msra.mxu0 %v2427
    %2449 = vmatmul.bf16.gmra.mxu0 %v2430
    %v2450 = vpop.f32.mrf.mxu0
    %v2451 = vadd.f32 0.0, %v2450
    %v2452 = vpop.f32.mrf.mxu0
    %v2453 = vadd.f32 0.0, %v2452
    %2454 = vmatmul.bf16.gmra.mxu0 %v2433
    %v2455 = vpop.f32.mrf.mxu0
    %v2456 = vadd.f32 0.0, %v2455
    %v2457 = vpop.f32.mrf.mxu0
    %v2458 = vadd.f32 0.0, %v2457
    %2459 = vmatmul.bf16.gmra.mxu0 %v2436
    %v2460 = vpop.f32.mrf.mxu0
    %v2461 = vadd.f32 0.0, %v2460
    %v2462 = vpop.f32.mrf.mxu0
    %v2463 = vadd.f32 0.0, %v2462
    %2464 = vmatmul.bf16.gmra.mxu0 %v2439
    %v2465 = vpop.f32.mrf.mxu0
    %v2466 = vadd.f32 0.0, %v2465
    %v2467 = vpop.f32.mrf.mxu0
    %v2468 = vadd.f32 0.0, %v2467
    %2469 = vdwg.mxu0
    %v2470 = vmul.f32 %v2451, %v2118
    %v2471 = vmul.f32 %v2453, %v2119
    %v2472 = vmul.f32 %v2456, %v2120
    %v2473 = vmul.f32 %v2458, %v2121
    %v2474 = vmul.f32 %v2461, %v2122
    %v2475 = vmul.f32 %v2463, %v2123
    %v2476 = vmul.f32 %v2466, %v2124
    %v2477 = vmul.f32 %v2468, %v2125
    %v2478 = vsel %vm2185, %v2470, 0.0
    %v2479 = vsel %vm2185, %v2472, 0.0
    %v2480 = vadd.f32 %v2478, %v2479
    %v2481 = vsel %vm2185, %v2474, 0.0
    %v2482 = vadd.f32 %v2480, %v2481
    %v2483 = vsel %vm2185, %v2476, 0.0
    %v2484 = vadd.f32 %v2482, %v2483
    %v2485 = vsel %vm2185, %v2471, 0.0
    %v2486 = vsel %vm2185, %v2473, 0.0
    %v2487 = vadd.f32 %v2485, %v2486
    %v2488 = vsel %vm2185, %v2475, 0.0
    %v2489 = vadd.f32 %v2487, %v2488
    %v2490 = vsel %vm2185, %v2477, 0.0
    %v2491 = vadd.f32 %v2489, %v2490
    %v2492 = vpack.c.bf16 %v2079, %v2078
    %v2493 = vpack.c.bf16 %v2081, %v2080
    %v2494 = vpack.c.bf16 %v2083, %v2082
    %v2495 = vpack.c.bf16 %v2085, %v2084
    %v2498 = vunpack.c.l.b16 %v2112
    %v2499 = vunpack.c.l.b16 %v2113
    %v2500 = vpack.c.b16 %v2499, %v2498
    %v2503 = vsel %vm1397, %v2492, 0
    %v2506 = vsel %vm1397, %v2493, 0
    %v2509 = vsel %vm1397, %v2494, 0
    %v2512 = vsel %vm1397, %v2495, 0
    %2514 = vmatpush.bf16.msra.mxu0 0
    %2515 = vmatpush.bf16.msra.mxu0 0
    %2516 = vmatpush.bf16.msra.mxu0 0
    %2517 = vmatpush.bf16.msra.mxu0 0
    %2518 = vmatpush.bf16.msra.mxu0 0
    %2519 = vmatpush.bf16.msra.mxu0 0
    %2520 = vmatpush.bf16.msra.mxu0 0
    %2521 = vmatpush.bf16.msra.mxu0 %v2500
    %2522 = vmatmul.bf16.gmra.mxu0 %v2503
    %v2523 = vpop.f32.mrf.mxu0
    %v2524 = vadd.f32 0.0, %v2523
    %v2525 = vpop.f32.mrf.mxu0
    %v2526 = vadd.f32 0.0, %v2525
    %2527 = vmatmul.bf16.gmra.mxu0 %v2506
    %v2528 = vpop.f32.mrf.mxu0
    %v2529 = vadd.f32 0.0, %v2528
    %v2530 = vpop.f32.mrf.mxu0
    %v2531 = vadd.f32 0.0, %v2530
    %2532 = vmatmul.bf16.gmra.mxu0 %v2509
    %v2533 = vpop.f32.mrf.mxu0
    %v2534 = vadd.f32 0.0, %v2533
    %v2535 = vpop.f32.mrf.mxu0
    %v2536 = vadd.f32 0.0, %v2535
    %2537 = vmatmul.bf16.gmra.mxu0 %v2512
    %v2538 = vpop.f32.mrf.mxu0
    %v2539 = vadd.f32 0.0, %v2538
    %v2540 = vpop.f32.mrf.mxu0
    %v2541 = vadd.f32 0.0, %v2540
    %2542 = vdwg.mxu0
    %v2543 = vmul.f32 %v2524, %v2118
    %v2544 = vmul.f32 %v2526, %v2119
    %v2545 = vmul.f32 %v2529, %v2120
    %v2546 = vmul.f32 %v2531, %v2121
    %v2547 = vmul.f32 %v2534, %v2122
    %v2548 = vmul.f32 %v2536, %v2123
    %v2549 = vmul.f32 %v2539, %v2124
    %v2550 = vmul.f32 %v2541, %v2125
    %v2551 = vsel %vm2185, %v2543, 0.0
    %v2552 = vsel %vm2185, %v2545, 0.0
    %v2553 = vadd.f32 %v2551, %v2552
    %v2554 = vsel %vm2185, %v2547, 0.0
    %v2555 = vadd.f32 %v2553, %v2554
    %v2556 = vsel %vm2185, %v2549, 0.0
    %v2557 = vadd.f32 %v2555, %v2556
    %v2558 = vsel %vm2185, %v2544, 0.0
    %v2559 = vsel %vm2185, %v2546, 0.0
    %v2560 = vadd.f32 %v2558, %v2559
    %v2561 = vsel %vm2185, %v2548, 0.0
    %v2562 = vadd.f32 %v2560, %v2561
    %v2563 = vsel %vm2185, %v2550, 0.0
    %v2564 = vadd.f32 %v2562, %v2563
    %v2565 = vpack.c.bf16 %v2087, %v2086
    %v2566 = vpack.c.bf16 %v2089, %v2088
    %v2567 = vpack.c.bf16 %v2091, %v2090
    %v2568 = vpack.c.bf16 %v2093, %v2092
    %v2571 = vunpack.c.l.b16 %v2114
    %v2572 = vunpack.c.l.b16 %v2115
    %v2573 = vpack.c.b16 %v2572, %v2571
    %v2576 = vsel %vm1397, %v2565, 0
    %v2579 = vsel %vm1397, %v2566, 0
    %v2582 = vsel %vm1397, %v2567, 0
    %v2585 = vsel %vm1397, %v2568, 0
    %2587 = vmatpush.bf16.msra.mxu0 0
    %2588 = vmatpush.bf16.msra.mxu0 0
    %2589 = vmatpush.bf16.msra.mxu0 0
    %2590 = vmatpush.bf16.msra.mxu0 0
    %2591 = vmatpush.bf16.msra.mxu0 0
    %2592 = vmatpush.bf16.msra.mxu0 0
    %2593 = vmatpush.bf16.msra.mxu0 0
    %2594 = vmatpush.bf16.msra.mxu0 %v2573
    %2595 = vmatmul.bf16.gmra.mxu0 %v2576
    %v2596 = vpop.f32.mrf.mxu0
    %v2597 = vadd.f32 0.0, %v2596
    %v2598 = vpop.f32.mrf.mxu0
    %v2599 = vadd.f32 0.0, %v2598
    %2600 = vmatmul.bf16.gmra.mxu0 %v2579
    %v2601 = vpop.f32.mrf.mxu0
    %v2602 = vadd.f32 0.0, %v2601
    %v2603 = vpop.f32.mrf.mxu0
    %v2604 = vadd.f32 0.0, %v2603
    %2605 = vmatmul.bf16.gmra.mxu0 %v2582
    %v2606 = vpop.f32.mrf.mxu0
    %v2607 = vadd.f32 0.0, %v2606
    %v2608 = vpop.f32.mrf.mxu0
    %v2609 = vadd.f32 0.0, %v2608
    %2610 = vmatmul.bf16.gmra.mxu0 %v2585
    %v2611 = vpop.f32.mrf.mxu0
    %v2612 = vadd.f32 0.0, %v2611
    %v2613 = vpop.f32.mrf.mxu0
    %v2614 = vadd.f32 0.0, %v2613
    %2615 = vdwg.mxu0
    %v2616 = vmul.f32 %v2597, %v2118
    %v2617 = vmul.f32 %v2599, %v2119
    %v2618 = vmul.f32 %v2602, %v2120
    %v2619 = vmul.f32 %v2604, %v2121
    %v2620 = vmul.f32 %v2607, %v2122
    %v2621 = vmul.f32 %v2609, %v2123
    %v2622 = vmul.f32 %v2612, %v2124
    %v2623 = vmul.f32 %v2614, %v2125
    %v2624 = vsel %vm2185, %v2616, 0.0
    %v2625 = vsel %vm2185, %v2618, 0.0
    %v2626 = vadd.f32 %v2624, %v2625
    %v2627 = vsel %vm2185, %v2620, 0.0
    %v2628 = vadd.f32 %v2626, %v2627
    %v2629 = vsel %vm2185, %v2622, 0.0
    %v2630 = vadd.f32 %v2628, %v2629
    %v2631 = vsel %vm2185, %v2617, 0.0
    %v2632 = vsel %vm2185, %v2619, 0.0
    %v2633 = vadd.f32 %v2631, %v2632
    %v2634 = vsel %vm2185, %v2621, 0.0
    %v2635 = vadd.f32 %v2633, %v2634
    %v2636 = vsel %vm2185, %v2623, 0.0
    %v2637 = vadd.f32 %v2635, %v2636
    %v2638 = vpack.c.bf16 %v2095, %v2094
    %v2639 = vpack.c.bf16 %v2097, %v2096
    %v2640 = vpack.c.bf16 %v2099, %v2098
    %v2641 = vpack.c.bf16 %v2101, %v2100
    %v2644 = vunpack.c.l.b16 %v2116
    %v2645 = vunpack.c.l.b16 %v2117
    %v2646 = vpack.c.b16 %v2645, %v2644
    %v2649 = vsel %vm1397, %v2638, 0
    %v2652 = vsel %vm1397, %v2639, 0
    %v2655 = vsel %vm1397, %v2640, 0
    %v2658 = vsel %vm1397, %v2641, 0
    %2660 = vmatpush.bf16.msra.mxu0 0
    %2661 = vmatpush.bf16.msra.mxu0 0
    %2662 = vmatpush.bf16.msra.mxu0 0
    %2663 = vmatpush.bf16.msra.mxu0 0
    %2664 = vmatpush.bf16.msra.mxu0 0
    %2665 = vmatpush.bf16.msra.mxu0 0
    %2666 = vmatpush.bf16.msra.mxu0 0
    %2667 = vmatpush.bf16.msra.mxu0 %v2646
    %2668 = vmatmul.bf16.gmra.mxu0 %v2649
    %v2669 = vpop.f32.mrf.mxu0
    %v2670 = vadd.f32 0.0, %v2669
    %v2671 = vpop.f32.mrf.mxu0
    %v2672 = vadd.f32 0.0, %v2671
    %2673 = vmatmul.bf16.gmra.mxu0 %v2652
    %v2674 = vpop.f32.mrf.mxu0
    %v2675 = vadd.f32 0.0, %v2674
    %v2676 = vpop.f32.mrf.mxu0
    %v2677 = vadd.f32 0.0, %v2676
    %2678 = vmatmul.bf16.gmra.mxu0 %v2655
    %v2679 = vpop.f32.mrf.mxu0
    %v2680 = vadd.f32 0.0, %v2679
    %v2681 = vpop.f32.mrf.mxu0
    %v2682 = vadd.f32 0.0, %v2681
    %2683 = vmatmul.bf16.gmra.mxu0 %v2658
    %v2684 = vpop.f32.mrf.mxu0
    %v2685 = vadd.f32 0.0, %v2684
    %v2686 = vpop.f32.mrf.mxu0
    %v2687 = vadd.f32 0.0, %v2686
    %2688 = vdwg.mxu0
    %v2689 = vmul.f32 %v2670, %v2118
    %v2690 = vmul.f32 %v2672, %v2119
    %v2691 = vmul.f32 %v2675, %v2120
    %v2692 = vmul.f32 %v2677, %v2121
    %v2693 = vmul.f32 %v2680, %v2122
    %v2694 = vmul.f32 %v2682, %v2123
    %v2695 = vmul.f32 %v2685, %v2124
    %v2696 = vmul.f32 %v2687, %v2125
    %v2697 = vsel %vm2185, %v2689, 0.0
    %v2698 = vsel %vm2185, %v2691, 0.0
    %v2699 = vadd.f32 %v2697, %v2698
    %v2700 = vsel %vm2185, %v2693, 0.0
    %v2701 = vadd.f32 %v2699, %v2700
    %v2702 = vsel %vm2185, %v2695, 0.0
    %v2703 = vadd.f32 %v2701, %v2702
    %v2704 = vsel %vm2185, %v2690, 0.0
    %v2705 = vsel %vm2185, %v2692, 0.0
    %v2706 = vadd.f32 %v2704, %v2705
    %v2707 = vsel %vm2185, %v2694, 0.0
    %v2708 = vadd.f32 %v2706, %v2707
    %v2709 = vsel %vm2185, %v2696, 0.0
    %v2710 = vadd.f32 %v2708, %v2709
    %2713 = vrot.lane.b32.xlu0 %v2265, 64
    %v2714 = vpop.permute.xlu0 %2713
    %2715 = vrot.lane.b32.xlu0 %v2272, 64
    %v2716 = vpop.permute.xlu0 %2715
    %v2719 = vsel %vm2185, %v2192, %v2714
    %v2720 = vsel %vm2185, %v2199, %v2716
    %2723 = vrot.lane.b32.xlu0 %v2411, 64
    %v2724 = vpop.permute.xlu0 %2723
    %2725 = vrot.lane.b32.xlu0 %v2418, 64
    %v2726 = vpop.permute.xlu0 %2725
    %v2729 = vsel %vm2185, %v2338, %v2724
    %v2730 = vsel %vm2185, %v2345, %v2726
    %2733 = vrot.lane.b32.xlu0 %v2557, 64
    %v2734 = vpop.permute.xlu0 %2733
    %2735 = vrot.lane.b32.xlu0 %v2564, 64
    %v2736 = vpop.permute.xlu0 %2735
    %v2739 = vsel %vm2185, %v2484, %v2734
    %v2740 = vsel %vm2185, %v2491, %v2736
    %2743 = vrot.lane.b32.xlu0 %v2703, 64
    %v2744 = vpop.permute.xlu0 %2743
    %2745 = vrot.lane.b32.xlu0 %v2710, 64
    %v2746 = vpop.permute.xlu0 %2745
    %v2749 = vsel %vm2185, %v2630, %v2744
    %v2750 = vsel %vm2185, %v2637, %v2746
    %vm2751 = vcmp.gt.f32.partialorder %v2719, 0.0
    %vm2752 = vcmp.gt.f32.partialorder %v2720, 0.0
    %vm2753 = vcmp.gt.f32.partialorder %v2729, 0.0
    %vm2754 = vcmp.gt.f32.partialorder %v2730, 0.0
    %vm2755 = vcmp.gt.f32.partialorder %v2739, 0.0
    %vm2756 = vcmp.gt.f32.partialorder %v2740, 0.0
    %vm2757 = vcmp.gt.f32.partialorder %v2749, 0.0
    %vm2758 = vcmp.gt.f32.partialorder %v2750, 0.0
    %v2759 = vmin.f32 %v2719, 0.0
    %v2760 = vmin.f32 %v2720, 0.0
    %v2761 = vmin.f32 %v2729, 0.0
    %v2762 = vmin.f32 %v2730, 0.0
    %v2763 = vmin.f32 %v2739, 0.0
    %v2764 = vmin.f32 %v2740, 0.0
    %v2765 = vmin.f32 %v2749, 0.0
    %v2766 = vmin.f32 %v2750, 0.0
    %v2767 = vmul.f32 %v2759, 1.442695
    %v2768 = vpow.pop %v2767
    %v2769 = vmul.f32 %v2760, 1.442695
    %v2770 = vpow.pop %v2769
    %v2771 = vmul.f32 %v2761, 1.442695
    %v2772 = vpow.pop %v2771
    %v2773 = vmul.f32 %v2762, 1.442695
    %v2774 = vpow.pop %v2773
    %v2775 = vmul.f32 %v2763, 1.442695
    %v2776 = vpow.pop %v2775
    %v2777 = vmul.f32 %v2764, 1.442695
    %v2778 = vpow.pop %v2777
    %v2779 = vmul.f32 %v2765, 1.442695
    %v2780 = vpow.pop %v2779
    %v2781 = vmul.f32 %v2766, 1.442695
    %v2782 = vpow.pop %v2781
    %v2783 = vsub.f32 %v2768, 1.0
    %v2784 = vsub.f32 %v2770, 1.0
    %v2785 = vsub.f32 %v2772, 1.0
    %v2786 = vsub.f32 %v2774, 1.0
    %v2787 = vsub.f32 %v2776, 1.0
    %v2788 = vsub.f32 %v2778, 1.0
    %v2789 = vsub.f32 %v2780, 1.0
    %v2790 = vsub.f32 %v2782, 1.0
    %v2791 = vsel %vm2751, %v2719, %v2783
    %v2792 = vsel %vm2752, %v2720, %v2784
    %v2793 = vsel %vm2753, %v2729, %v2785
    %v2794 = vsel %vm2754, %v2730, %v2786
    %v2795 = vsel %vm2755, %v2739, %v2787
    %v2796 = vsel %vm2756, %v2740, %v2788
    %v2797 = vsel %vm2757, %v2749, %v2789
    %v2798 = vsel %vm2758, %v2750, %v2790
    %2799 = vst [vmem:[#allocation5] sm:$0xff] %v2791
    %2800 = vst [vmem:[#allocation5 + $0x8] sm:$0xff] %v2792
    %2801 = vst [vmem:[#allocation5 + $0x10] sm:$0xff] %v2793
    %2802 = vst [vmem:[#allocation5 + $0x18] sm:$0xff] %v2794
    %2803 = vst [vmem:[#allocation5 + $0x20] sm:$0xff] %v2795
    %2804 = vst [vmem:[#allocation5 + $0x28] sm:$0xff] %v2796
    %2805 = vst [vmem:[#allocation5 + $0x30] sm:$0xff] %v2797
    %2806 = vst [vmem:[#allocation5 + $0x38] sm:$0xff] %v2798
    // Predicated region
    $region22: #{tpu_custom_call.1} parent=1 // pred_check
      _
    $region23: #{tpu_custom_call.1} parent=1 // pred_check_branch
      %2808 = sbr.rel (0) target = $region25
    $region24: #{tpu_custom_call.1} parent=1 // pred_region
      %2810 = vsyncadd [#allocation4], 0
      %s2811 = sshll.u32 [#allocation5], 4
      %s2812 = int_to_ptr.vmem [resolvable:$true] %s2811
      %s2813 = sshll.u32 %s4, 4
      %s2814 = int_to_ptr.hbm [resolvable:$true] %s2813
      %2819 = dma.vmem_to_hbm [thread:$0]  %s2812, 1024, %s2814, [#allocation4], 128, 128, 8
    $region25: #{tpu_custom_call.1} parent=1 // pred_fallthru
      _
    // Predicated region
    $region26: #{tpu_custom_call.1} parent=1 // pred_check
      _
    $region27: #{tpu_custom_call.1} parent=1 // pred_check_branch
      %2821 = sbr.rel (0) target = $region29
    $region28: #{tpu_custom_call.1} parent=1 // pred_region
      %2823 = dma.done [#allocation4], 1024
    $region29: #{tpu_custom_call.1} parent=1 // pred_fallthru
      _
    %2824 = vsyncpa [#allocation3], 1
    %2825 = vsyncpa [#allocation4], 1

</llo_original>
